<compile_context>
chip_gen: v7x
topology: tpu7x:2x2x1
jax: 0.10.0
libtpu: 0.0.40
codegen_flags: <defaults>
</compile_context>

<pallas_src>
import math
from functools import partial

import jax
import jax.numpy as jnp
from jax.experimental import pallas as pl
from jax.experimental.pallas import tpu as pltpu


# Operand dtype for the batched (non-serial) MXU matmuls.  bf16 cuts MXU passes
# ~3x and halves weight DMA bytes on v6e/v7x, but drifts past the 1e-3 check vs
# the f32 reference for larger H/T, so the default stays f32 here.
_MXU_DTYPE = jnp.float32


def _dot(a, b):
    return jnp.dot(a.astype(_MXU_DTYPE), b.astype(_MXU_DTYPE),
                   preferred_element_type=jnp.float32)


def _dot_f32(a, b):
    return jnp.dot(a, b, preferred_element_type=jnp.float32)


# ----------------------------- Pallas kernel ------------------------------ #

def mrnn_kernel(n_steps, n_features, rnn_hidden_size,
                # inputs
                xcat_ref,      # [T*B, 6F] time-major rows: [X_f|M_f|D_f|X_b|M_b|D_b]
                wih_ref,       # [6F, 6H]  block input weight, cols [r_f|r_b|z_f|z_b|n_f|n_b]
                bi_ref,        # [1, 6H]   folded input-side biases (same column layout)
                whh_ref,       # [2H, 6H]  block-diagonal recurrent weight (same col layout)
                bhn_ref,       # [1, 2H]   hidden-side n-gate bias [b_hn_f | b_hn_b]
                wp_ref,        # [2H, F]   concat-projection weight (wp.T)
                wfcn_ref,      # [3F, F]   stacked FCN weight rows [U*off ; V2 ; V1*off] (T)
                wfin_ref,      # [F, F]
                bias3_ref,     # [3, F]    rows [bp ; beta ; bfin]
                # outputs
                imputed_ref,   # [T*B, F]
                stats_ref,     # [3] SMEM  (masked SSE, mask sum, SSE)
                # scratch
                hs_ref):       # [T, B, 2H] VMEM  (fwd states in [:H], bwd in [H:])
    T, F_, H = n_steps, n_features, rnn_hidden_size
    TB = xcat_ref.shape[0]
    B = TB // T

    xcat = xcat_ref[...]                                   # [T*B, 6F]

    # ---- Stage 1: ONE fused input-side matmul (both directions, all gates) ----
    gi = (_dot(xcat, wih_ref[...]) + bi_ref[...]).reshape(T, B, 6 * H)

    whh = whh_ref[...]                                     # [2H, 6H]
    b_hn = bhn_ref[...]                                    # [1, 2H]

    # ---- Stage 2: fused fwd+bwd recurrence, one matmul per step on the serial
    #      path; hidden states go straight to VMEM scratch (bounded live ranges).
    h = jnp.zeros((B, 2 * H), jnp.float32)                 # [h_f | h_b]
    for t in range(T):                                     # T small & static -> unroll
        gi_t = gi[t]                                       # contiguous sublane block
        gh = _dot_f32(h, whh)                              # [B, 6H]
        r = jax.nn.sigmoid(gi_t[:, 0:2 * H] + gh[:, 0:2 * H])
        z = jax.nn.sigmoid(gi_t[:, 2 * H:4 * H] + gh[:, 2 * H:4 * H])
        n = jnp.tanh(gi_t[:, 4 * H:6 * H] + r * (gh[:, 4 * H:6 * H] + b_hn))
        h = (1.0 - z) * n + z * h
        hs_ref[t, :, :H] = h[:, :H]                        # forward, time order
        hs_ref[T - 1 - t, :, H:] = h[:, H:]                # backward, time-aligned

    # ---- Stage 3: projection + FCN + blend, batched over all T*B rows ----
    Hs = hs_ref[...].reshape(TB, 2 * H)
    x2 = xcat[:, :F_]                                      # forward X
    m2 = xcat[:, F_:2 * F_]                                # forward mask
    bias3 = bias3_ref[...]
    bp, beta, bfin = bias3[0:1], bias3[1:2], bias3[2:3]

    rnn_est = _dot(Hs, wp_ref[...]) + bp                   # single [TB,2H]x[2H,F]
    rnn_imp = m2 * x2 + (1.0 - m2) * rnn_est
    fcn_in = jnp.concatenate([xcat[:, :2 * F_], rnn_imp], axis=-1)   # [x | m | imp]
    h_fcn = jax.nn.sigmoid(_dot(fcn_in, wfcn_ref[...]) + beta)       # one fused FCN dot
    fcn = _dot(h_fcn, wfin_ref[...]) + bfin
    imp = m2 * x2 + (1.0 - m2) * fcn

    # TODO(synk): for production batch sizes restructure this epilogue/store to be
    # lane-dense (B*T on the lane axis) instead of F=4-lane-wide masked stores.
    imputed_ref[...] = imp                                 # single full-ref store

    # ---- Fused RMSE-loss statistics (scalars -> SMEM) ----
    d_rnn = rnn_est - x2
    d_fcn = fcn - rnn_imp
    stats_ref[0] = jnp.sum(d_rnn * d_rnn * m2)             # masked sum of squares
    stats_ref[1] = jnp.sum(m2)                             # mask count
    stats_ref[2] = jnp.sum(d_fcn * d_fcn)                  # unmasked sum of squares


# ---------------------- one-time parameter preparation --------------------- #

def prepare_mrnn_params(params, n_features, rnn_hidden_size):
    """Build the stacked / block-diagonal weight slabs ONCE (cacheable)."""
    F_, H = n_features, rnn_hidden_size
    off_diag = 1.0 - jnp.eye(F_, dtype=jnp.float32)

    def gate_blocks(w):    # PyTorch GRUCell stacks (r, z, n); return transposed blocks
        return w[:H].T, w[H:2 * H].T, w[2 * H:].T

    wir_f, wiz_f, win_f = gate_blocks(params["wih_f"])     # each [3F, H]
    wir_b, wiz_b, win_b = gate_blocks(params["wih_b"])
    whr_f, whz_f, whn_f = gate_blocks(params["whh_f"])     # each [H, H]
    whr_b, whz_b, whn_b = gate_blocks(params["whh_b"])

    zF = jnp.zeros((3 * F_, H), jnp.float32)
    zH = jnp.zeros((H, H), jnp.float32)

    # Input-side block weight: rows [x_f | x_b], cols [r_f|r_b|z_f|z_b|n_f|n_b].
    wih_big = jnp.concatenate([
        jnp.concatenate([wir_f, zF, wiz_f, zF, win_f, zF], axis=1),
        jnp.concatenate([zF, wir_b, zF, wiz_b, zF, win_b], axis=1),
    ], axis=0)                                             # [6F, 6H]

    # Recurrent block-diagonal weight: rows [h_f | h_b], same column layout.
    whh_big = jnp.concatenate([
        jnp.concatenate([whr_f, zH, whz_f, zH, whn_f, zH], axis=1),
        jnp.concatenate([zH, whr_b, zH, whz_b, zH, whn_b], axis=1),
    ], axis=0)                                             # [2H, 6H]

    bih_f, bhh_f = params["bih_f"], params["bhh_f"]
    bih_b, bhh_b = params["bih_b"], params["bhh_b"]
    # r and z gates get both biases folded; n keeps b_hn separate (GRUCell semantics).
    bi_big = jnp.concatenate([
        bih_f[:H] + bhh_f[:H],        bih_b[:H] + bhh_b[:H],
        bih_f[H:2 * H] + bhh_f[H:2 * H], bih_b[H:2 * H] + bhh_b[H:2 * H],
        bih_f[2 * H:],                bih_b[2 * H:],
    ])[None, :]                                            # [1, 6H]
    bhn_big = jnp.concatenate([bhh_f[2 * H:], bhh_b[2 * H:]])[None, :]   # [1, 2H]

    wp_t = params["wp"].T                                  # [2H, F]
    wfcn = jnp.concatenate([(params["U"] * off_diag).T,
                            params["V2"].T,
                            (params["V1"] * off_diag).T], axis=0)        # [3F, F]
    wfin_t = params["wfin"].T                              # [F, F]
    bias3 = jnp.stack([params["bp"], params["beta"], params["bfin"]])    # [3, F]

    return (wih_big, bi_big, whh_big, bhn_big, wp_t, wfcn, wfin_t, bias3)


# ------------------------------- wrapper ---------------------------------- #

def mrnn_forward(inputs, kernel_params, n_steps, n_features, rnn_hidden_size,
                 training=True):
    Xf = inputs["forward"]["X"]
    Mf = inputs["forward"]["missing_mask"]
    Df = inputs["forward"]["deltas"]
    Xb = inputs["backward"]["X"]
    Mb = inputs["backward"]["missing_mask"]
    Db = inputs["backward"]["deltas"]
    B, T, F_ = Xf.shape
    H = rnn_hidden_size
    TB = T * B

    # Wrapper-side concat + time-major flatten (free in XLA).  Lane layout is
    # [X_f | M_f | D_f | X_b | M_b | D_b] so the kernel re-uses x/m lanes.
    xcat = (jnp.concatenate([Xf, Mf, Df, Xb, Mb, Db], axis=-1)
            .transpose(1, 0, 2).reshape(TB, 6 * F_))

    args = (xcat,) + tuple(kernel_params)

    mm = lambda m, k, n: 2 * m * k * n
    flops = (mm(TB, 6 * F_, 6 * H)            # fused input-side matmul
             + T * mm(B, 2 * H, 6 * H)        # fused recurrence (1 matmul / step)
             + mm(TB, 2 * H, F_)              # concat projection
             + mm(TB, 3 * F_, F_)             # fused FCN hidden
             + mm(TB, F_, F_)                 # FCN output
             + 40 * TB * (H + F_))            # elementwise epilogue (rough)
    transcendentals = T * B * 6 * H + TB * F_
    bytes_accessed = int(sum(int(a.size) * a.dtype.itemsize for a in args)
                         + TB * F_ * 4 + 3 * 4)

    kernel = partial(mrnn_kernel, n_steps, n_features, rnn_hidden_size)
    # Grid-less: at these shapes everything fits comfortably in VMEM.
    # TODO(synk): for production B add a batch grid with
    # dimension_semantics=("parallel",) (uses the 2nd TC on v7x) and re-derive
    # the B-tile per generation (64 MiB VMEM on v7x vs 128 MiB on v5e/v6e).
    imputed2d, stats = pl.pallas_call(
        kernel,
        out_shape=(jax.ShapeDtypeStruct((TB, F_), jnp.float32),
                   jax.ShapeDtypeStruct((3,), jnp.float32)),
        in_specs=[pl.BlockSpec(memory_space=pltpu.MemorySpace.VMEM)] * len(args),
        out_specs=(pl.BlockSpec(memory_space=pltpu.MemorySpace.VMEM),
                   pl.BlockSpec(memory_space=pltpu.MemorySpace.SMEM)),
        scratch_shapes=[pltpu.VMEM((T, B, 2 * H), jnp.float32)],
        cost_estimate=pl.CostEstimate(flops=int(flops),
                                      transcendentals=int(transcendentals),
                                      bytes_accessed=bytes_accessed),
    )(*args)

    imputed = imputed2d.reshape(T, B, F_).transpose(1, 0, 2)
    results = {"imputed_data": imputed}
    if training:
        # pypots RMSE: sqrt(sum(sq*mask)/sum(mask)) masked, sqrt(mean(sq)) unmasked
        rnn_loss = jnp.sqrt(stats[0] / (stats[1] + 1e-12))
        fcn_loss = jnp.sqrt(stats[2] / float(TB * F_))
        results["loss"] = rnn_loss + fcn_loss
    return results


# --------------------------- pure-JAX reference ---------------------------- #

def _rmse(pred, target, mask=None):
    if mask is not None:
        return jnp.sqrt(jnp.sum(jnp.square(pred - target) * mask)
                        / (jnp.sum(mask) + 1e-12))
    return jnp.sqrt(jnp.mean(jnp.square(pred - target)))


def _ref_forward(inputs, params, n_steps, n_features, rnn_hidden_size):
    hi = jax.lax.Precision.HIGHEST
    F_, H = n_features, rnn_hidden_size
    off_diag = 1.0 - jnp.eye(F_, dtype=jnp.float32)

    def gru_dir(X, M, D, wih, whh, bih, bhh):
        B = X.shape[0]
        h = jnp.zeros((B, H), jnp.float32)
        hs = []
        for t in range(n_steps):
            xc = jnp.concatenate([X[:, t], M[:, t], D[:, t]], axis=1)
            gi = jnp.dot(xc, wih.T, precision=hi) + bih
            gh = jnp.dot(h, whh.T, precision=hi) + bhh
            r = jax.nn.sigmoid(gi[:, :H] + gh[:, :H])
            z = jax.nn.sigmoid(gi[:, H:2 * H] + gh[:, H:2 * H])
            n = jnp.tanh(gi[:, 2 * H:] + r * gh[:, 2 * H:])
            h = (1.0 - z) * n + z * h
            hs.append(h)
        return hs

    f = inputs["forward"]; b = inputs["backward"]
    hs_f = gru_dir(f["X"], f["missing_mask"], f["deltas"],
                   params["wih_f"], params["whh_f"], params["bih_f"], params["bhh_f"])
    hs_b = gru_dir(b["X"], b["missing_mask"], b["deltas"],
                   params["wih_b"], params["whh_b"], params["bih_b"], params["bhh_b"])[::-1]

    X, M = f["X"], f["missing_mask"]
    fcn_all, rnn_all, rnn_imp_all = [], [], []
    for t in range(n_steps):
        x, m = X[:, t], M[:, t]
        hcat = jnp.concatenate([hs_f[t], hs_b[t]], axis=1)
        rnn_est = jnp.dot(hcat, params["wp"].T, precision=hi) + params["bp"]
        rnn_imp = m * x + (1 - m) * rnn_est
        h_fcn = jax.nn.sigmoid(
            jnp.dot(x, (params["U"] * off_diag).T, precision=hi)
            + jnp.dot(rnn_imp, (params["V1"] * off_diag).T, precision=hi)
            + jnp.dot(m, params["V2"].T, precision=hi)
            + params["beta"])
        fcn = jnp.dot(h_fcn, params["wfin"].T, precision=hi) + params["bfin"]
        fcn_all.append(fcn); rnn_all.append(rnn_est); rnn_imp_all.append(rnn_imp)
    fcn_all = jnp.stack(fcn_all, axis=1)
    imputed = M * X + (1 - M) * fcn_all
    return {"imputed_data": imputed,
            "loss": _rmse(jnp.stack(rnn_all, 1), X, M)
                    + _rmse(fcn_all, jnp.stack(rnn_imp_all, 1))}


# ------------------------------- params init ------------------------------ #

def init_params(key, n_features, rnn_hidden_size):
    F_, H = n_features, rnn_hidden_size
    ks = jax.random.split(key, 16)

    def u(k, shape, bound):
        return jax.random.uniform(k, shape, jnp.float32, -bound, bound)

    g = 1.0 / math.sqrt(H)          # nn.GRUCell init bound
    p = 1.0 / math.sqrt(2 * H)      # Linear(2H, F)
    q = 1.0 / math.sqrt(F_)         # FCN params / Linear(F, F)
    return dict(
        wih_f=u(ks[0], (3 * H, 3 * F_), g), whh_f=u(ks[1], (3 * H, H), g),
        bih_f=u(ks[2], (3 * H,), g),        bhh_f=u(ks[3], (3 * H,), g),
        wih_b=u(ks[4], (3 * H, 3 * F_), g), whh_b=u(ks[5], (3 * H, H), g),
        bih_b=u(ks[6], (3 * H,), g),        bhh_b=u(ks[7], (3 * H,), g),
        wp=u(ks[8], (F_, 2 * H), p),        bp=u(ks[9], (F_,), p),
        U=u(ks[10], (F_, F_), q), V1=u(ks[11], (F_, F_), q),
        V2=u(ks[12], (F_, F_), q), beta=u(ks[13], (F_,), q),
        wfin=u(ks[14], (F_, F_), q), bfin=u(ks[15], (F_,), q),
    )


# ---------------------------------- main ----------------------------------- #

if __name__ == "__main__":
    B, T, F_, H = 2, 8, 4, 32

    key = jax.random.PRNGKey(0)
    kx, km, kd, kdb, kp = jax.random.split(key, 5)

    M = (jax.random.uniform(km, (B, T, F_)) > 0.3).astype(jnp.float32)
    X = jax.random.normal(kx, (B, T, F_), jnp.float32) * M   # observed values only
    Df = jax.random.uniform(kd, (B, T, F_), jnp.float32, 0.0, 2.0)
    Db = jax.random.uniform(kdb, (B, T, F_), jnp.float32, 0.0, 2.0)

    inputs = {
        "forward":  {"X": X, "missing_mask": M, "deltas": Df},
        "backward": {"X": X[:, ::-1, :], "missing_mask": M[:, ::-1, :], "deltas": Db},
    }
    params = init_params(kp, F_, H)
    kernel_params = prepare_mrnn_params(params, F_, H)   # one-time, cacheable glue

    results = mrnn_forward(inputs, kernel_params, T, F_, H, training=True)
    imputed = jax.block_until_ready(results["imputed_data"])
    loss = jax.block_until_ready(results["loss"])

    ref = _ref_forward(inputs, params, T, F_, H)
    assert imputed.shape == (B, T, F_)
    assert jnp.allclose(imputed, ref["imputed_data"], atol=1e-3, rtol=1e-3)
    assert jnp.allclose(loss, ref["loss"], atol=1e-3, rtol=1e-3)

    print("KERNEL_OK")
</pallas_src>

<mosaic_0001>
module attributes {stable_mosaic.version = 11 : i64} {
  func.func @mrnn_kernel(%arg0: memref<16x24xf32, #tpu.memory_space<vmem>>, %arg1: memref<24x192xf32, #tpu.memory_space<vmem>>, %arg2: memref<1x192xf32, #tpu.memory_space<vmem>>, %arg3: memref<64x192xf32, #tpu.memory_space<vmem>>, %arg4: memref<1x64xf32, #tpu.memory_space<vmem>>, %arg5: memref<64x4xf32, #tpu.memory_space<vmem>>, %arg6: memref<12x4xf32, #tpu.memory_space<vmem>>, %arg7: memref<4x4xf32, #tpu.memory_space<vmem>>, %arg8: memref<3x4xf32, #tpu.memory_space<vmem>>, %arg9: memref<16x4xf32, #tpu.memory_space<vmem>>, %arg10: memref<3xf32, #tpu.memory_space<smem>>, %arg11: memref<8x2x64xf32, #tpu.memory_space<vmem>>) attributes {dimension_semantics = [], scalar_prefetch = 0 : i64, scratch_operands = 1 : i64, tpu.core_type = #tpu.core_type<tc>} {
    %c0 = arith.constant 0 : index
    %c0_0 = arith.constant 0 : index
    %0 = vector.load %arg0[%c0, %c0_0] : memref<16x24xf32, #tpu.memory_space<vmem>>, vector<16x24xf32>
    %c0_1 = arith.constant 0 : index
    %c0_2 = arith.constant 0 : index
    %1 = vector.load %arg1[%c0_1, %c0_2] : memref<24x192xf32, #tpu.memory_space<vmem>>, vector<24x192xf32>
    %cst = arith.constant dense<0.000000e+00> : vector<16x192xf32>
    %2 = tpu.matmul %0, %1, %cst {dimension_numbers = #tpu.dot_dimension_numbers<[1], [0], [0], [1], [0, 0, 1, 1], [], []>} : vector<16x24xf32>, vector<24x192xf32>, vector<16x192xf32> -> vector<16x192xf32>
    %c0_3 = arith.constant 0 : index
    %c0_4 = arith.constant 0 : index
    %3 = vector.load %arg2[%c0_3, %c0_4] : memref<1x192xf32, #tpu.memory_space<vmem>>, vector<1x192xf32>
    %4 = vector.broadcast %3 : vector<1x192xf32> to vector<16x192xf32>
    %5 = arith.addf %2, %4 : vector<16x192xf32>
    %6 = vector.shape_cast %5 : vector<16x192xf32> to vector<8x2x192xf32>
    %c0_5 = arith.constant 0 : index
    %c0_6 = arith.constant 0 : index
    %7 = vector.load %arg3[%c0_5, %c0_6] : memref<64x192xf32, #tpu.memory_space<vmem>>, vector<64x192xf32>
    %c0_7 = arith.constant 0 : index
    %c0_8 = arith.constant 0 : index
    %8 = vector.load %arg4[%c0_7, %c0_8] : memref<1x64xf32, #tpu.memory_space<vmem>>, vector<1x64xf32>
    %cst_9 = arith.constant 0.000000e+00 : f32
    %9 = vector.broadcast %cst_9 : f32 to vector<2x64xf32>
    %10 = vector.extract_strided_slice %6 {offsets = [0, 0, 0], sizes = [1, 2, 192], strides = [1, 1, 1]} : vector<8x2x192xf32> to vector<1x2x192xf32>
    %11 = vector.shape_cast %10 : vector<1x2x192xf32> to vector<2x192xf32>
    %cst_10 = arith.constant dense<0.000000e+00> : vector<2x192xf32>
    %12 = tpu.matmul %9, %7, %cst_10 {dimension_numbers = #tpu.dot_dimension_numbers<[1], [0], [0], [1], [0, 0, 1, 1], [], []>} : vector<2x64xf32>, vector<64x192xf32>, vector<2x192xf32> -> vector<2x192xf32>
    %13 = vector.extract_strided_slice %11 {offsets = [0, 0], sizes = [2, 64], strides = [1, 1]} : vector<2x192xf32> to vector<2x64xf32>
    %14 = vector.extract_strided_slice %12 {offsets = [0, 0], sizes = [2, 64], strides = [1, 1]} : vector<2x192xf32> to vector<2x64xf32>
    %15 = arith.addf %13, %14 : vector<2x64xf32>
    %16 = arith.negf %15 : vector<2x64xf32>
    %17 = math.exp %16 : vector<2x64xf32>
    %cst_11 = arith.constant 1.000000e+00 : f32
    %18 = vector.broadcast %cst_11 : f32 to vector<2x64xf32>
    %19 = arith.addf %18, %17 : vector<2x64xf32>
    %20 = arith.divf %18, %19 : vector<2x64xf32>
    %21 = vector.extract_strided_slice %11 {offsets = [0, 64], sizes = [2, 64], strides = [1, 1]} : vector<2x192xf32> to vector<2x64xf32>
    %22 = vector.extract_strided_slice %12 {offsets = [0, 64], sizes = [2, 64], strides = [1, 1]} : vector<2x192xf32> to vector<2x64xf32>
    %23 = arith.addf %21, %22 : vector<2x64xf32>
    %24 = arith.negf %23 : vector<2x64xf32>
    %25 = math.exp %24 : vector<2x64xf32>
    %cst_12 = arith.constant 1.000000e+00 : f32
    %26 = vector.broadcast %cst_12 : f32 to vector<2x64xf32>
    %27 = arith.addf %26, %25 : vector<2x64xf32>
    %28 = arith.divf %26, %27 : vector<2x64xf32>
    %29 = vector.extract_strided_slice %11 {offsets = [0, 128], sizes = [2, 64], strides = [1, 1]} : vector<2x192xf32> to vector<2x64xf32>
    %30 = vector.extract_strided_slice %12 {offsets = [0, 128], sizes = [2, 64], strides = [1, 1]} : vector<2x192xf32> to vector<2x64xf32>
    %31 = vector.broadcast %8 : vector<1x64xf32> to vector<2x64xf32>
    %32 = arith.addf %30, %31 : vector<2x64xf32>
    %33 = arith.mulf %20, %32 : vector<2x64xf32>
    %34 = arith.addf %29, %33 : vector<2x64xf32>
    %35 = math.tanh %34 : vector<2x64xf32>
    %cst_13 = arith.constant 1.000000e+00 : f32
    %36 = vector.broadcast %cst_13 : f32 to vector<2x64xf32>
    %37 = arith.subf %36, %28 : vector<2x64xf32>
    %38 = arith.mulf %37, %35 : vector<2x64xf32>
    %39 = arith.mulf %28, %9 : vector<2x64xf32>
    %40 = arith.addf %38, %39 : vector<2x64xf32>
    %41 = vector.extract_strided_slice %40 {offsets = [0, 0], sizes = [2, 32], strides = [1, 1]} : vector<2x64xf32> to vector<2x32xf32>
    %c0_14 = arith.constant 0 : index
    %c0_15 = arith.constant 0 : index
    %c0_16 = arith.constant 0 : index
    %42 = vector.load %arg11[%c0_14, %c0_15, %c0_16] : memref<8x2x64xf32, #tpu.memory_space<vmem>>, vector<1x2x32xf32>
    %43 = vector.shape_cast %42 : vector<1x2x32xf32> to vector<2x32xf32>
    %44 = vector.shape_cast %41 : vector<2x32xf32> to vector<1x2x32xf32>
    tpu.vector_store %arg11[%c0_14, %c0_15, %c0_16], %44 {strides = array<i32>} : memref<8x2x64xf32, #tpu.memory_space<vmem>>, vector<1x2x32xf32>,
    %45 = vector.extract_strided_slice %40 {offsets = [0, 32], sizes = [2, 32], strides = [1, 1]} : vector<2x64xf32> to vector<2x32xf32>
    %c7 = arith.constant 7 : index
    %c0_17 = arith.constant 0 : index
    %c32 = arith.constant 32 : index
    %46 = vector.load %arg11[%c7, %c0_17, %c32] : memref<8x2x64xf32, #tpu.memory_space<vmem>>, vector<1x2x32xf32>
    %47 = vector.shape_cast %46 : vector<1x2x32xf32> to vector<2x32xf32>
    %48 = vector.shape_cast %45 : vector<2x32xf32> to vector<1x2x32xf32>
    tpu.vector_store %arg11[%c7, %c0_17, %c32], %48 {strides = array<i32>} : memref<8x2x64xf32, #tpu.memory_space<vmem>>, vector<1x2x32xf32>,
    %49 = vector.extract_strided_slice %6 {offsets = [1, 0, 0], sizes = [1, 2, 192], strides = [1, 1, 1]} : vector<8x2x192xf32> to vector<1x2x192xf32>
    %50 = vector.shape_cast %49 : vector<1x2x192xf32> to vector<2x192xf32>
    %cst_18 = arith.constant dense<0.000000e+00> : vector<2x192xf32>
    %51 = tpu.matmul %40, %7, %cst_18 {dimension_numbers = #tpu.dot_dimension_numbers<[1], [0], [0], [1], [0, 0, 1, 1], [], []>} : vector<2x64xf32>, vector<64x192xf32>, vector<2x192xf32> -> vector<2x192xf32>
    %52 = vector.extract_strided_slice %50 {offsets = [0, 0], sizes = [2, 64], strides = [1, 1]} : vector<2x192xf32> to vector<2x64xf32>
    %53 = vector.extract_strided_slice %51 {offsets = [0, 0], sizes = [2, 64], strides = [1, 1]} : vector<2x192xf32> to vector<2x64xf32>
    %54 = arith.addf %52, %53 : vector<2x64xf32>
    %55 = arith.negf %54 : vector<2x64xf32>
    %56 = math.exp %55 : vector<2x64xf32>
    %cst_19 = arith.constant 1.000000e+00 : f32
    %57 = vector.broadcast %cst_19 : f32 to vector<2x64xf32>
    %58 = arith.addf %57, %56 : vector<2x64xf32>
    %59 = arith.divf %57, %58 : vector<2x64xf32>
    %60 = vector.extract_strided_slice %50 {offsets = [0, 64], sizes = [2, 64], strides = [1, 1]} : vector<2x192xf32> to vector<2x64xf32>
    %61 = vector.extract_strided_slice %51 {offsets = [0, 64], sizes = [2, 64], strides = [1, 1]} : vector<2x192xf32> to vector<2x64xf32>
    %62 = arith.addf %60, %61 : vector<2x64xf32>
    %63 = arith.negf %62 : vector<2x64xf32>
    %64 = math.exp %63 : vector<2x64xf32>
    %cst_20 = arith.constant 1.000000e+00 : f32
    %65 = vector.broadcast %cst_20 : f32 to vector<2x64xf32>
    %66 = arith.addf %65, %64 : vector<2x64xf32>
    %67 = arith.divf %65, %66 : vector<2x64xf32>
    %68 = vector.extract_strided_slice %50 {offsets = [0, 128], sizes = [2, 64], strides = [1, 1]} : vector<2x192xf32> to vector<2x64xf32>
    %69 = vector.extract_strided_slice %51 {offsets = [0, 128], sizes = [2, 64], strides = [1, 1]} : vector<2x192xf32> to vector<2x64xf32>
    %70 = vector.broadcast %8 : vector<1x64xf32> to vector<2x64xf32>
    %71 = arith.addf %69, %70 : vector<2x64xf32>
    %72 = arith.mulf %59, %71 : vector<2x64xf32>
    %73 = arith.addf %68, %72 : vector<2x64xf32>
    %74 = math.tanh %73 : vector<2x64xf32>
    %cst_21 = arith.constant 1.000000e+00 : f32
    %75 = vector.broadcast %cst_21 : f32 to vector<2x64xf32>
    %76 = arith.subf %75, %67 : vector<2x64xf32>
    %77 = arith.mulf %76, %74 : vector<2x64xf32>
    %78 = arith.mulf %67, %40 : vector<2x64xf32>
    %79 = arith.addf %77, %78 : vector<2x64xf32>
    %80 = vector.extract_strided_slice %79 {offsets = [0, 0], sizes = [2, 32], strides = [1, 1]} : vector<2x64xf32> to vector<2x32xf32>
    %c1 = arith.constant 1 : index
    %c0_22 = arith.constant 0 : index
    %c0_23 = arith.constant 0 : index
    %81 = vector.load %arg11[%c1, %c0_22, %c0_23] : memref<8x2x64xf32, #tpu.memory_space<vmem>>, vector<1x2x32xf32>
    %82 = vector.shape_cast %81 : vector<1x2x32xf32> to vector<2x32xf32>
    %83 = vector.shape_cast %80 : vector<2x32xf32> to vector<1x2x32xf32>
    tpu.vector_store %arg11[%c1, %c0_22, %c0_23], %83 {strides = array<i32>} : memref<8x2x64xf32, #tpu.memory_space<vmem>>, vector<1x2x32xf32>,
    %84 = vector.extract_strided_slice %79 {offsets = [0, 32], sizes = [2, 32], strides = [1, 1]} : vector<2x64xf32> to vector<2x32xf32>
    %c6 = arith.constant 6 : index
    %c0_24 = arith.constant 0 : index
    %c32_25 = arith.constant 32 : index
    %85 = vector.load %arg11[%c6, %c0_24, %c32_25] : memref<8x2x64xf32, #tpu.memory_space<vmem>>, vector<1x2x32xf32>
    %86 = vector.shape_cast %85 : vector<1x2x32xf32> to vector<2x32xf32>
    %87 = vector.shape_cast %84 : vector<2x32xf32> to vector<1x2x32xf32>
    tpu.vector_store %arg11[%c6, %c0_24, %c32_25], %87 {strides = array<i32>} : memref<8x2x64xf32, #tpu.memory_space<vmem>>, vector<1x2x32xf32>,
    %88 = vector.extract_strided_slice %6 {offsets = [2, 0, 0], sizes = [1, 2, 192], strides = [1, 1, 1]} : vector<8x2x192xf32> to vector<1x2x192xf32>
    %89 = vector.shape_cast %88 : vector<1x2x192xf32> to vector<2x192xf32>
    %cst_26 = arith.constant dense<0.000000e+00> : vector<2x192xf32>
    %90 = tpu.matmul %79, %7, %cst_26 {dimension_numbers = #tpu.dot_dimension_numbers<[1], [0], [0], [1], [0, 0, 1, 1], [], []>} : vector<2x64xf32>, vector<64x192xf32>, vector<2x192xf32> -> vector<2x192xf32>
    %91 = vector.extract_strided_slice %89 {offsets = [0, 0], sizes = [2, 64], strides = [1, 1]} : vector<2x192xf32> to vector<2x64xf32>
    %92 = vector.extract_strided_slice %90 {offsets = [0, 0], sizes = [2, 64], strides = [1, 1]} : vector<2x192xf32> to vector<2x64xf32>
    %93 = arith.addf %91, %92 : vector<2x64xf32>
    %94 = arith.negf %93 : vector<2x64xf32>
    %95 = math.exp %94 : vector<2x64xf32>
    %cst_27 = arith.constant 1.000000e+00 : f32
    %96 = vector.broadcast %cst_27 : f32 to vector<2x64xf32>
    %97 = arith.addf %96, %95 : vector<2x64xf32>
    %98 = arith.divf %96, %97 : vector<2x64xf32>
    %99 = vector.extract_strided_slice %89 {offsets = [0, 64], sizes = [2, 64], strides = [1, 1]} : vector<2x192xf32> to vector<2x64xf32>
    %100 = vector.extract_strided_slice %90 {offsets = [0, 64], sizes = [2, 64], strides = [1, 1]} : vector<2x192xf32> to vector<2x64xf32>
    %101 = arith.addf %99, %100 : vector<2x64xf32>
    %102 = arith.negf %101 : vector<2x64xf32>
    %103 = math.exp %102 : vector<2x64xf32>
    %cst_28 = arith.constant 1.000000e+00 : f32
    %104 = vector.broadcast %cst_28 : f32 to vector<2x64xf32>
    %105 = arith.addf %104, %103 : vector<2x64xf32>
    %106 = arith.divf %104, %105 : vector<2x64xf32>
    %107 = vector.extract_strided_slice %89 {offsets = [0, 128], sizes = [2, 64], strides = [1, 1]} : vector<2x192xf32> to vector<2x64xf32>
    %108 = vector.extract_strided_slice %90 {offsets = [0, 128], sizes = [2, 64], strides = [1, 1]} : vector<2x192xf32> to vector<2x64xf32>
    %109 = vector.broadcast %8 : vector<1x64xf32> to vector<2x64xf32>
    %110 = arith.addf %108, %109 : vector<2x64xf32>
    %111 = arith.mulf %98, %110 : vector<2x64xf32>
    %112 = arith.addf %107, %111 : vector<2x64xf32>
    %113 = math.tanh %112 : vector<2x64xf32>
    %cst_29 = arith.constant 1.000000e+00 : f32
    %114 = vector.broadcast %cst_29 : f32 to vector<2x64xf32>
    %115 = arith.subf %114, %106 : vector<2x64xf32>
    %116 = arith.mulf %115, %113 : vector<2x64xf32>
    %117 = arith.mulf %106, %79 : vector<2x64xf32>
    %118 = arith.addf %116, %117 : vector<2x64xf32>
    %119 = vector.extract_strided_slice %118 {offsets = [0, 0], sizes = [2, 32], strides = [1, 1]} : vector<2x64xf32> to vector<2x32xf32>
    %c2 = arith.constant 2 : index
    %c0_30 = arith.constant 0 : index
    %c0_31 = arith.constant 0 : index
    %120 = vector.load %arg11[%c2, %c0_30, %c0_31] : memref<8x2x64xf32, #tpu.memory_space<vmem>>, vector<1x2x32xf32>
    %121 = vector.shape_cast %120 : vector<1x2x32xf32> to vector<2x32xf32>
    %122 = vector.shape_cast %119 : vector<2x32xf32> to vector<1x2x32xf32>
    tpu.vector_store %arg11[%c2, %c0_30, %c0_31], %122 {strides = array<i32>} : memref<8x2x64xf32, #tpu.memory_space<vmem>>, vector<1x2x32xf32>,
    %123 = vector.extract_strided_slice %118 {offsets = [0, 32], sizes = [2, 32], strides = [1, 1]} : vector<2x64xf32> to vector<2x32xf32>
    %c5 = arith.constant 5 : index
    %c0_32 = arith.constant 0 : index
    %c32_33 = arith.constant 32 : index
    %124 = vector.load %arg11[%c5, %c0_32, %c32_33] : memref<8x2x64xf32, #tpu.memory_space<vmem>>, vector<1x2x32xf32>
    %125 = vector.shape_cast %124 : vector<1x2x32xf32> to vector<2x32xf32>
    %126 = vector.shape_cast %123 : vector<2x32xf32> to vector<1x2x32xf32>
    tpu.vector_store %arg11[%c5, %c0_32, %c32_33], %126 {strides = array<i32>} : memref<8x2x64xf32, #tpu.memory_space<vmem>>, vector<1x2x32xf32>,
    %127 = vector.extract_strided_slice %6 {offsets = [3, 0, 0], sizes = [1, 2, 192], strides = [1, 1, 1]} : vector<8x2x192xf32> to vector<1x2x192xf32>
    %128 = vector.shape_cast %127 : vector<1x2x192xf32> to vector<2x192xf32>
    %cst_34 = arith.constant dense<0.000000e+00> : vector<2x192xf32>
    %129 = tpu.matmul %118, %7, %cst_34 {dimension_numbers = #tpu.dot_dimension_numbers<[1], [0], [0], [1], [0, 0, 1, 1], [], []>} : vector<2x64xf32>, vector<64x192xf32>, vector<2x192xf32> -> vector<2x192xf32>
    %130 = vector.extract_strided_slice %128 {offsets = [0, 0], sizes = [2, 64], strides = [1, 1]} : vector<2x192xf32> to vector<2x64xf32>
    %131 = vector.extract_strided_slice %129 {offsets = [0, 0], sizes = [2, 64], strides = [1, 1]} : vector<2x192xf32> to vector<2x64xf32>
    %132 = arith.addf %130, %131 : vector<2x64xf32>
    %133 = arith.negf %132 : vector<2x64xf32>
    %134 = math.exp %133 : vector<2x64xf32>
    %cst_35 = arith.constant 1.000000e+00 : f32
    %135 = vector.broadcast %cst_35 : f32 to vector<2x64xf32>
    %136 = arith.addf %135, %134 : vector<2x64xf32>
    %137 = arith.divf %135, %136 : vector<2x64xf32>
    %138 = vector.extract_strided_slice %128 {offsets = [0, 64], sizes = [2, 64], strides = [1, 1]} : vector<2x192xf32> to vector<2x64xf32>
    %139 = vector.extract_strided_slice %129 {offsets = [0, 64], sizes = [2, 64], strides = [1, 1]} : vector<2x192xf32> to vector<2x64xf32>
    %140 = arith.addf %138, %139 : vector<2x64xf32>
    %141 = arith.negf %140 : vector<2x64xf32>
    %142 = math.exp %141 : vector<2x64xf32>
    %cst_36 = arith.constant 1.000000e+00 : f32
    %143 = vector.broadcast %cst_36 : f32 to vector<2x64xf32>
    %144 = arith.addf %143, %142 : vector<2x64xf32>
    %145 = arith.divf %143, %144 : vector<2x64xf32>
    %146 = vector.extract_strided_slice %128 {offsets = [0, 128], sizes = [2, 64], strides = [1, 1]} : vector<2x192xf32> to vector<2x64xf32>
    %147 = vector.extract_strided_slice %129 {offsets = [0, 128], sizes = [2, 64], strides = [1, 1]} : vector<2x192xf32> to vector<2x64xf32>
    %148 = vector.broadcast %8 : vector<1x64xf32> to vector<2x64xf32>
    %149 = arith.addf %147, %148 : vector<2x64xf32>
    %150 = arith.mulf %137, %149 : vector<2x64xf32>
    %151 = arith.addf %146, %150 : vector<2x64xf32>
    %152 = math.tanh %151 : vector<2x64xf32>
    %cst_37 = arith.constant 1.000000e+00 : f32
    %153 = vector.broadcast %cst_37 : f32 to vector<2x64xf32>
    %154 = arith.subf %153, %145 : vector<2x64xf32>
    %155 = arith.mulf %154, %152 : vector<2x64xf32>
    %156 = arith.mulf %145, %118 : vector<2x64xf32>
    %157 = arith.addf %155, %156 : vector<2x64xf32>
    %158 = vector.extract_strided_slice %157 {offsets = [0, 0], sizes = [2, 32], strides = [1, 1]} : vector<2x64xf32> to vector<2x32xf32>
    %c3 = arith.constant 3 : index
    %c0_38 = arith.constant 0 : index
    %c0_39 = arith.constant 0 : index
    %159 = vector.load %arg11[%c3, %c0_38, %c0_39] : memref<8x2x64xf32, #tpu.memory_space<vmem>>, vector<1x2x32xf32>
    %160 = vector.shape_cast %159 : vector<1x2x32xf32> to vector<2x32xf32>
    %161 = vector.shape_cast %158 : vector<2x32xf32> to vector<1x2x32xf32>
    tpu.vector_store %arg11[%c3, %c0_38, %c0_39], %161 {strides = array<i32>} : memref<8x2x64xf32, #tpu.memory_space<vmem>>, vector<1x2x32xf32>,
    %162 = vector.extract_strided_slice %157 {offsets = [0, 32], sizes = [2, 32], strides = [1, 1]} : vector<2x64xf32> to vector<2x32xf32>
    %c4 = arith.constant 4 : index
    %c0_40 = arith.constant 0 : index
    %c32_41 = arith.constant 32 : index
    %163 = vector.load %arg11[%c4, %c0_40, %c32_41] : memref<8x2x64xf32, #tpu.memory_space<vmem>>, vector<1x2x32xf32>
    %164 = vector.shape_cast %163 : vector<1x2x32xf32> to vector<2x32xf32>
    %165 = vector.shape_cast %162 : vector<2x32xf32> to vector<1x2x32xf32>
    tpu.vector_store %arg11[%c4, %c0_40, %c32_41], %165 {strides = array<i32>} : memref<8x2x64xf32, #tpu.memory_space<vmem>>, vector<1x2x32xf32>,
    %166 = vector.extract_strided_slice %6 {offsets = [4, 0, 0], sizes = [1, 2, 192], strides = [1, 1, 1]} : vector<8x2x192xf32> to vector<1x2x192xf32>
    %167 = vector.shape_cast %166 : vector<1x2x192xf32> to vector<2x192xf32>
    %cst_42 = arith.constant dense<0.000000e+00> : vector<2x192xf32>
    %168 = tpu.matmul %157, %7, %cst_42 {dimension_numbers = #tpu.dot_dimension_numbers<[1], [0], [0], [1], [0, 0, 1, 1], [], []>} : vector<2x64xf32>, vector<64x192xf32>, vector<2x192xf32> -> vector<2x192xf32>
    %169 = vector.extract_strided_slice %167 {offsets = [0, 0], sizes = [2, 64], strides = [1, 1]} : vector<2x192xf32> to vector<2x64xf32>
    %170 = vector.extract_strided_slice %168 {offsets = [0, 0], sizes = [2, 64], strides = [1, 1]} : vector<2x192xf32> to vector<2x64xf32>
    %171 = arith.addf %169, %170 : vector<2x64xf32>
    %172 = arith.negf %171 : vector<2x64xf32>
    %173 = math.exp %172 : vector<2x64xf32>
    %cst_43 = arith.constant 1.000000e+00 : f32
    %174 = vector.broadcast %cst_43 : f32 to vector<2x64xf32>
    %175 = arith.addf %174, %173 : vector<2x64xf32>
    %176 = arith.divf %174, %175 : vector<2x64xf32>
    %177 = vector.extract_strided_slice %167 {offsets = [0, 64], sizes = [2, 64], strides = [1, 1]} : vector<2x192xf32> to vector<2x64xf32>
    %178 = vector.extract_strided_slice %168 {offsets = [0, 64], sizes = [2, 64], strides = [1, 1]} : vector<2x192xf32> to vector<2x64xf32>
    %179 = arith.addf %177, %178 : vector<2x64xf32>
    %180 = arith.negf %179 : vector<2x64xf32>
    %181 = math.exp %180 : vector<2x64xf32>
    %cst_44 = arith.constant 1.000000e+00 : f32
    %182 = vector.broadcast %cst_44 : f32 to vector<2x64xf32>
    %183 = arith.addf %182, %181 : vector<2x64xf32>
    %184 = arith.divf %182, %183 : vector<2x64xf32>
    %185 = vector.extract_strided_slice %167 {offsets = [0, 128], sizes = [2, 64], strides = [1, 1]} : vector<2x192xf32> to vector<2x64xf32>
    %186 = vector.extract_strided_slice %168 {offsets = [0, 128], sizes = [2, 64], strides = [1, 1]} : vector<2x192xf32> to vector<2x64xf32>
    %187 = vector.broadcast %8 : vector<1x64xf32> to vector<2x64xf32>
    %188 = arith.addf %186, %187 : vector<2x64xf32>
    %189 = arith.mulf %176, %188 : vector<2x64xf32>
    %190 = arith.addf %185, %189 : vector<2x64xf32>
    %191 = math.tanh %190 : vector<2x64xf32>
    %cst_45 = arith.constant 1.000000e+00 : f32
    %192 = vector.broadcast %cst_45 : f32 to vector<2x64xf32>
    %193 = arith.subf %192, %184 : vector<2x64xf32>
    %194 = arith.mulf %193, %191 : vector<2x64xf32>
    %195 = arith.mulf %184, %157 : vector<2x64xf32>
    %196 = arith.addf %194, %195 : vector<2x64xf32>
    %197 = vector.extract_strided_slice %196 {offsets = [0, 0], sizes = [2, 32], strides = [1, 1]} : vector<2x64xf32> to vector<2x32xf32>
    %c4_46 = arith.constant 4 : index
    %c0_47 = arith.constant 0 : index
    %c0_48 = arith.constant 0 : index
    %198 = vector.load %arg11[%c4_46, %c0_47, %c0_48] : memref<8x2x64xf32, #tpu.memory_space<vmem>>, vector<1x2x32xf32>
    %199 = vector.shape_cast %198 : vector<1x2x32xf32> to vector<2x32xf32>
    %200 = vector.shape_cast %197 : vector<2x32xf32> to vector<1x2x32xf32>
    tpu.vector_store %arg11[%c4_46, %c0_47, %c0_48], %200 {strides = array<i32>} : memref<8x2x64xf32, #tpu.memory_space<vmem>>, vector<1x2x32xf32>,
    %201 = vector.extract_strided_slice %196 {offsets = [0, 32], sizes = [2, 32], strides = [1, 1]} : vector<2x64xf32> to vector<2x32xf32>
    %c3_49 = arith.constant 3 : index
    %c0_50 = arith.constant 0 : index
    %c32_51 = arith.constant 32 : index
    %202 = vector.load %arg11[%c3_49, %c0_50, %c32_51] : memref<8x2x64xf32, #tpu.memory_space<vmem>>, vector<1x2x32xf32>
    %203 = vector.shape_cast %202 : vector<1x2x32xf32> to vector<2x32xf32>
    %204 = vector.shape_cast %201 : vector<2x32xf32> to vector<1x2x32xf32>
    tpu.vector_store %arg11[%c3_49, %c0_50, %c32_51], %204 {strides = array<i32>} : memref<8x2x64xf32, #tpu.memory_space<vmem>>, vector<1x2x32xf32>,
    %205 = vector.extract_strided_slice %6 {offsets = [5, 0, 0], sizes = [1, 2, 192], strides = [1, 1, 1]} : vector<8x2x192xf32> to vector<1x2x192xf32>
    %206 = vector.shape_cast %205 : vector<1x2x192xf32> to vector<2x192xf32>
    %cst_52 = arith.constant dense<0.000000e+00> : vector<2x192xf32>
    %207 = tpu.matmul %196, %7, %cst_52 {dimension_numbers = #tpu.dot_dimension_numbers<[1], [0], [0], [1], [0, 0, 1, 1], [], []>} : vector<2x64xf32>, vector<64x192xf32>, vector<2x192xf32> -> vector<2x192xf32>
    %208 = vector.extract_strided_slice %206 {offsets = [0, 0], sizes = [2, 64], strides = [1, 1]} : vector<2x192xf32> to vector<2x64xf32>
    %209 = vector.extract_strided_slice %207 {offsets = [0, 0], sizes = [2, 64], strides = [1, 1]} : vector<2x192xf32> to vector<2x64xf32>
    %210 = arith.addf %208, %209 : vector<2x64xf32>
    %211 = arith.negf %210 : vector<2x64xf32>
    %212 = math.exp %211 : vector<2x64xf32>
    %cst_53 = arith.constant 1.000000e+00 : f32
    %213 = vector.broadcast %cst_53 : f32 to vector<2x64xf32>
    %214 = arith.addf %213, %212 : vector<2x64xf32>
    %215 = arith.divf %213, %214 : vector<2x64xf32>
    %216 = vector.extract_strided_slice %206 {offsets = [0, 64], sizes = [2, 64], strides = [1, 1]} : vector<2x192xf32> to vector<2x64xf32>
    %217 = vector.extract_strided_slice %207 {offsets = [0, 64], sizes = [2, 64], strides = [1, 1]} : vector<2x192xf32> to vector<2x64xf32>
    %218 = arith.addf %216, %217 : vector<2x64xf32>
    %219 = arith.negf %218 : vector<2x64xf32>
    %220 = math.exp %219 : vector<2x64xf32>
    %cst_54 = arith.constant 1.000000e+00 : f32
    %221 = vector.broadcast %cst_54 : f32 to vector<2x64xf32>
    %222 = arith.addf %221, %220 : vector<2x64xf32>
    %223 = arith.divf %221, %222 : vector<2x64xf32>
    %224 = vector.extract_strided_slice %206 {offsets = [0, 128], sizes = [2, 64], strides = [1, 1]} : vector<2x192xf32> to vector<2x64xf32>
    %225 = vector.extract_strided_slice %207 {offsets = [0, 128], sizes = [2, 64], strides = [1, 1]} : vector<2x192xf32> to vector<2x64xf32>
    %226 = vector.broadcast %8 : vector<1x64xf32> to vector<2x64xf32>
    %227 = arith.addf %225, %226 : vector<2x64xf32>
    %228 = arith.mulf %215, %227 : vector<2x64xf32>
    %229 = arith.addf %224, %228 : vector<2x64xf32>
    %230 = math.tanh %229 : vector<2x64xf32>
    %cst_55 = arith.constant 1.000000e+00 : f32
    %231 = vector.broadcast %cst_55 : f32 to vector<2x64xf32>
    %232 = arith.subf %231, %223 : vector<2x64xf32>
    %233 = arith.mulf %232, %230 : vector<2x64xf32>
    %234 = arith.mulf %223, %196 : vector<2x64xf32>
    %235 = arith.addf %233, %234 : vector<2x64xf32>
    %236 = vector.extract_strided_slice %235 {offsets = [0, 0], sizes = [2, 32], strides = [1, 1]} : vector<2x64xf32> to vector<2x32xf32>
    %c5_56 = arith.constant 5 : index
    %c0_57 = arith.constant 0 : index
    %c0_58 = arith.constant 0 : index
    %237 = vector.load %arg11[%c5_56, %c0_57, %c0_58] : memref<8x2x64xf32, #tpu.memory_space<vmem>>, vector<1x2x32xf32>
    %238 = vector.shape_cast %237 : vector<1x2x32xf32> to vector<2x32xf32>
    %239 = vector.shape_cast %236 : vector<2x32xf32> to vector<1x2x32xf32>
    tpu.vector_store %arg11[%c5_56, %c0_57, %c0_58], %239 {strides = array<i32>} : memref<8x2x64xf32, #tpu.memory_space<vmem>>, vector<1x2x32xf32>,
    %240 = vector.extract_strided_slice %235 {offsets = [0, 32], sizes = [2, 32], strides = [1, 1]} : vector<2x64xf32> to vector<2x32xf32>
    %c2_59 = arith.constant 2 : index
    %c0_60 = arith.constant 0 : index
    %c32_61 = arith.constant 32 : index
    %241 = vector.load %arg11[%c2_59, %c0_60, %c32_61] : memref<8x2x64xf32, #tpu.memory_space<vmem>>, vector<1x2x32xf32>
    %242 = vector.shape_cast %241 : vector<1x2x32xf32> to vector<2x32xf32>
    %243 = vector.shape_cast %240 : vector<2x32xf32> to vector<1x2x32xf32>
    tpu.vector_store %arg11[%c2_59, %c0_60, %c32_61], %243 {strides = array<i32>} : memref<8x2x64xf32, #tpu.memory_space<vmem>>, vector<1x2x32xf32>,
    %244 = vector.extract_strided_slice %6 {offsets = [6, 0, 0], sizes = [1, 2, 192], strides = [1, 1, 1]} : vector<8x2x192xf32> to vector<1x2x192xf32>
    %245 = vector.shape_cast %244 : vector<1x2x192xf32> to vector<2x192xf32>
    %cst_62 = arith.constant dense<0.000000e+00> : vector<2x192xf32>
    %246 = tpu.matmul %235, %7, %cst_62 {dimension_numbers = #tpu.dot_dimension_numbers<[1], [0], [0], [1], [0, 0, 1, 1], [], []>} : vector<2x64xf32>, vector<64x192xf32>, vector<2x192xf32> -> vector<2x192xf32>
    %247 = vector.extract_strided_slice %245 {offsets = [0, 0], sizes = [2, 64], strides = [1, 1]} : vector<2x192xf32> to vector<2x64xf32>
    %248 = vector.extract_strided_slice %246 {offsets = [0, 0], sizes = [2, 64], strides = [1, 1]} : vector<2x192xf32> to vector<2x64xf32>
    %249 = arith.addf %247, %248 : vector<2x64xf32>
    %250 = arith.negf %249 : vector<2x64xf32>
    %251 = math.exp %250 : vector<2x64xf32>
    %cst_63 = arith.constant 1.000000e+00 : f32
    %252 = vector.broadcast %cst_63 : f32 to vector<2x64xf32>
    %253 = arith.addf %252, %251 : vector<2x64xf32>
    %254 = arith.divf %252, %253 : vector<2x64xf32>
    %255 = vector.extract_strided_slice %245 {offsets = [0, 64], sizes = [2, 64], strides = [1, 1]} : vector<2x192xf32> to vector<2x64xf32>
    %256 = vector.extract_strided_slice %246 {offsets = [0, 64], sizes = [2, 64], strides = [1, 1]} : vector<2x192xf32> to vector<2x64xf32>
    %257 = arith.addf %255, %256 : vector<2x64xf32>
    %258 = arith.negf %257 : vector<2x64xf32>
    %259 = math.exp %258 : vector<2x64xf32>
    %cst_64 = arith.constant 1.000000e+00 : f32
    %260 = vector.broadcast %cst_64 : f32 to vector<2x64xf32>
    %261 = arith.addf %260, %259 : vector<2x64xf32>
    %262 = arith.divf %260, %261 : vector<2x64xf32>
    %263 = vector.extract_strided_slice %245 {offsets = [0, 128], sizes = [2, 64], strides = [1, 1]} : vector<2x192xf32> to vector<2x64xf32>
    %264 = vector.extract_strided_slice %246 {offsets = [0, 128], sizes = [2, 64], strides = [1, 1]} : vector<2x192xf32> to vector<2x64xf32>
    %265 = vector.broadcast %8 : vector<1x64xf32> to vector<2x64xf32>
    %266 = arith.addf %264, %265 : vector<2x64xf32>
    %267 = arith.mulf %254, %266 : vector<2x64xf32>
    %268 = arith.addf %263, %267 : vector<2x64xf32>
    %269 = math.tanh %268 : vector<2x64xf32>
    %cst_65 = arith.constant 1.000000e+00 : f32
    %270 = vector.broadcast %cst_65 : f32 to vector<2x64xf32>
    %271 = arith.subf %270, %262 : vector<2x64xf32>
    %272 = arith.mulf %271, %269 : vector<2x64xf32>
    %273 = arith.mulf %262, %235 : vector<2x64xf32>
    %274 = arith.addf %272, %273 : vector<2x64xf32>
    %275 = vector.extract_strided_slice %274 {offsets = [0, 0], sizes = [2, 32], strides = [1, 1]} : vector<2x64xf32> to vector<2x32xf32>
    %c6_66 = arith.constant 6 : index
    %c0_67 = arith.constant 0 : index
    %c0_68 = arith.constant 0 : index
    %276 = vector.load %arg11[%c6_66, %c0_67, %c0_68] : memref<8x2x64xf32, #tpu.memory_space<vmem>>, vector<1x2x32xf32>
    %277 = vector.shape_cast %276 : vector<1x2x32xf32> to vector<2x32xf32>
    %278 = vector.shape_cast %275 : vector<2x32xf32> to vector<1x2x32xf32>
    tpu.vector_store %arg11[%c6_66, %c0_67, %c0_68], %278 {strides = array<i32>} : memref<8x2x64xf32, #tpu.memory_space<vmem>>, vector<1x2x32xf32>,
    %279 = vector.extract_strided_slice %274 {offsets = [0, 32], sizes = [2, 32], strides = [1, 1]} : vector<2x64xf32> to vector<2x32xf32>
    %c1_69 = arith.constant 1 : index
    %c0_70 = arith.constant 0 : index
    %c32_71 = arith.constant 32 : index
    %280 = vector.load %arg11[%c1_69, %c0_70, %c32_71] : memref<8x2x64xf32, #tpu.memory_space<vmem>>, vector<1x2x32xf32>
    %281 = vector.shape_cast %280 : vector<1x2x32xf32> to vector<2x32xf32>
    %282 = vector.shape_cast %279 : vector<2x32xf32> to vector<1x2x32xf32>
    tpu.vector_store %arg11[%c1_69, %c0_70, %c32_71], %282 {strides = array<i32>} : memref<8x2x64xf32, #tpu.memory_space<vmem>>, vector<1x2x32xf32>,
    %283 = vector.extract_strided_slice %6 {offsets = [7, 0, 0], sizes = [1, 2, 192], strides = [1, 1, 1]} : vector<8x2x192xf32> to vector<1x2x192xf32>
    %284 = vector.shape_cast %283 : vector<1x2x192xf32> to vector<2x192xf32>
    %cst_72 = arith.constant dense<0.000000e+00> : vector<2x192xf32>
    %285 = tpu.matmul %274, %7, %cst_72 {dimension_numbers = #tpu.dot_dimension_numbers<[1], [0], [0], [1], [0, 0, 1, 1], [], []>} : vector<2x64xf32>, vector<64x192xf32>, vector<2x192xf32> -> vector<2x192xf32>
    %286 = vector.extract_strided_slice %284 {offsets = [0, 0], sizes = [2, 64], strides = [1, 1]} : vector<2x192xf32> to vector<2x64xf32>
    %287 = vector.extract_strided_slice %285 {offsets = [0, 0], sizes = [2, 64], strides = [1, 1]} : vector<2x192xf32> to vector<2x64xf32>
    %288 = arith.addf %286, %287 : vector<2x64xf32>
    %289 = arith.negf %288 : vector<2x64xf32>
    %290 = math.exp %289 : vector<2x64xf32>
    %cst_73 = arith.constant 1.000000e+00 : f32
    %291 = vector.broadcast %cst_73 : f32 to vector<2x64xf32>
    %292 = arith.addf %291, %290 : vector<2x64xf32>
    %293 = arith.divf %291, %292 : vector<2x64xf32>
    %294 = vector.extract_strided_slice %284 {offsets = [0, 64], sizes = [2, 64], strides = [1, 1]} : vector<2x192xf32> to vector<2x64xf32>
    %295 = vector.extract_strided_slice %285 {offsets = [0, 64], sizes = [2, 64], strides = [1, 1]} : vector<2x192xf32> to vector<2x64xf32>
    %296 = arith.addf %294, %295 : vector<2x64xf32>
    %297 = arith.negf %296 : vector<2x64xf32>
    %298 = math.exp %297 : vector<2x64xf32>
    %cst_74 = arith.constant 1.000000e+00 : f32
    %299 = vector.broadcast %cst_74 : f32 to vector<2x64xf32>
    %300 = arith.addf %299, %298 : vector<2x64xf32>
    %301 = arith.divf %299, %300 : vector<2x64xf32>
    %302 = vector.extract_strided_slice %284 {offsets = [0, 128], sizes = [2, 64], strides = [1, 1]} : vector<2x192xf32> to vector<2x64xf32>
    %303 = vector.extract_strided_slice %285 {offsets = [0, 128], sizes = [2, 64], strides = [1, 1]} : vector<2x192xf32> to vector<2x64xf32>
    %304 = vector.broadcast %8 : vector<1x64xf32> to vector<2x64xf32>
    %305 = arith.addf %303, %304 : vector<2x64xf32>
    %306 = arith.mulf %293, %305 : vector<2x64xf32>
    %307 = arith.addf %302, %306 : vector<2x64xf32>
    %308 = math.tanh %307 : vector<2x64xf32>
    %cst_75 = arith.constant 1.000000e+00 : f32
    %309 = vector.broadcast %cst_75 : f32 to vector<2x64xf32>
    %310 = arith.subf %309, %301 : vector<2x64xf32>
    %311 = arith.mulf %310, %308 : vector<2x64xf32>
    %312 = arith.mulf %301, %274 : vector<2x64xf32>
    %313 = arith.addf %311, %312 : vector<2x64xf32>
    %314 = vector.extract_strided_slice %313 {offsets = [0, 0], sizes = [2, 32], strides = [1, 1]} : vector<2x64xf32> to vector<2x32xf32>
    %c7_76 = arith.constant 7 : index
    %c0_77 = arith.constant 0 : index
    %c0_78 = arith.constant 0 : index
    %315 = vector.load %arg11[%c7_76, %c0_77, %c0_78] : memref<8x2x64xf32, #tpu.memory_space<vmem>>, vector<1x2x32xf32>
    %316 = vector.shape_cast %315 : vector<1x2x32xf32> to vector<2x32xf32>
    %317 = vector.shape_cast %314 : vector<2x32xf32> to vector<1x2x32xf32>
    tpu.vector_store %arg11[%c7_76, %c0_77, %c0_78], %317 {strides = array<i32>} : memref<8x2x64xf32, #tpu.memory_space<vmem>>, vector<1x2x32xf32>,
    %318 = vector.extract_strided_slice %313 {offsets = [0, 32], sizes = [2, 32], strides = [1, 1]} : vector<2x64xf32> to vector<2x32xf32>
    %c0_79 = arith.constant 0 : index
    %c0_80 = arith.constant 0 : index
    %c32_81 = arith.constant 32 : index
    %319 = vector.load %arg11[%c0_79, %c0_80, %c32_81] : memref<8x2x64xf32, #tpu.memory_space<vmem>>, vector<1x2x32xf32>
    %320 = vector.shape_cast %319 : vector<1x2x32xf32> to vector<2x32xf32>
    %321 = vector.shape_cast %318 : vector<2x32xf32> to vector<1x2x32xf32>
    tpu.vector_store %arg11[%c0_79, %c0_80, %c32_81], %321 {strides = array<i32>} : memref<8x2x64xf32, #tpu.memory_space<vmem>>, vector<1x2x32xf32>,
    %c0_82 = arith.constant 0 : index
    %c0_83 = arith.constant 0 : index
    %c0_84 = arith.constant 0 : index
    %322 = vector.load %arg11[%c0_82, %c0_83, %c0_84] : memref<8x2x64xf32, #tpu.memory_space<vmem>>, vector<8x2x64xf32>
    %323 = vector.shape_cast %322 : vector<8x2x64xf32> to vector<16x64xf32>
    %324 = vector.extract_strided_slice %0 {offsets = [0, 0], sizes = [16, 4], strides = [1, 1]} : vector<16x24xf32> to vector<16x4xf32>
    %325 = vector.extract_strided_slice %0 {offsets = [0, 4], sizes = [16, 4], strides = [1, 1]} : vector<16x24xf32> to vector<16x4xf32>
    %c0_85 = arith.constant 0 : index
    %c0_86 = arith.constant 0 : index
    %326 = vector.load %arg8[%c0_85, %c0_86] : memref<3x4xf32, #tpu.memory_space<vmem>>, vector<3x4xf32>
    %327 = vector.extract_strided_slice %326 {offsets = [0, 0], sizes = [1, 4], strides = [1, 1]} : vector<3x4xf32> to vector<1x4xf32>
    %328 = vector.extract_strided_slice %326 {offsets = [1, 0], sizes = [1, 4], strides = [1, 1]} : vector<3x4xf32> to vector<1x4xf32>
    %329 = vector.extract_strided_slice %326 {offsets = [2, 0], sizes = [1, 4], strides = [1, 1]} : vector<3x4xf32> to vector<1x4xf32>
    %c0_87 = arith.constant 0 : index
    %c0_88 = arith.constant 0 : index
    %330 = vector.load %arg5[%c0_87, %c0_88] : memref<64x4xf32, #tpu.memory_space<vmem>>, vector<64x4xf32>
    %cst_89 = arith.constant dense<0.000000e+00> : vector<16x4xf32>
    %331 = tpu.matmul %323, %330, %cst_89 {dimension_numbers = #tpu.dot_dimension_numbers<[1], [0], [0], [1], [0, 0, 1, 1], [], []>} : vector<16x64xf32>, vector<64x4xf32>, vector<16x4xf32> -> vector<16x4xf32>
    %332 = vector.broadcast %327 : vector<1x4xf32> to vector<16x4xf32>
    %333 = arith.addf %331, %332 : vector<16x4xf32>
    %334 = arith.mulf %325, %324 : vector<16x4xf32>
    %cst_90 = arith.constant 1.000000e+00 : f32
    %335 = vector.broadcast %cst_90 : f32 to vector<16x4xf32>
    %336 = arith.subf %335, %325 : vector<16x4xf32>
    %337 = arith.mulf %336, %333 : vector<16x4xf32>
    %338 = arith.addf %334, %337 : vector<16x4xf32>
    %339 = vector.extract_strided_slice %0 {offsets = [0, 0], sizes = [16, 8], strides = [1, 1]} : vector<16x24xf32> to vector<16x8xf32>
    %340 = tpu.concatenate %339, %338 in 1 : vector<16x8xf32>, vector<16x4xf32> -> vector<16x12xf32>
    %c0_91 = arith.constant 0 : index
    %c0_92 = arith.constant 0 : index
    %341 = vector.load %arg6[%c0_91, %c0_92] : memref<12x4xf32, #tpu.memory_space<vmem>>, vector<12x4xf32>
    %cst_93 = arith.constant dense<0.000000e+00> : vector<16x4xf32>
    %342 = tpu.matmul %340, %341, %cst_93 {dimension_numbers = #tpu.dot_dimension_numbers<[1], [0], [0], [1], [0, 0, 1, 1], [], []>} : vector<16x12xf32>, vector<12x4xf32>, vector<16x4xf32> -> vector<16x4xf32>
    %343 = vector.broadcast %328 : vector<1x4xf32> to vector<16x4xf32>
    %344 = arith.addf %342, %343 : vector<16x4xf32>
    %345 = arith.negf %344 : vector<16x4xf32>
    %346 = math.exp %345 : vector<16x4xf32>
    %cst_94 = arith.constant 1.000000e+00 : f32
    %347 = vector.broadcast %cst_94 : f32 to vector<16x4xf32>
    %348 = arith.addf %347, %346 : vector<16x4xf32>
    %349 = arith.divf %347, %348 : vector<16x4xf32>
    %c0_95 = arith.constant 0 : index
    %c0_96 = arith.constant 0 : index
    %350 = vector.load %arg7[%c0_95, %c0_96] : memref<4x4xf32, #tpu.memory_space<vmem>>, vector<4x4xf32>
    %cst_97 = arith.constant dense<0.000000e+00> : vector<16x4xf32>
    %351 = tpu.matmul %349, %350, %cst_97 {dimension_numbers = #tpu.dot_dimension_numbers<[1], [0], [0], [1], [0, 0, 1, 1], [], []>} : vector<16x4xf32>, vector<4x4xf32>, vector<16x4xf32> -> vector<16x4xf32>
    %352 = vector.broadcast %329 : vector<1x4xf32> to vector<16x4xf32>
    %353 = arith.addf %351, %352 : vector<16x4xf32>
    %354 = arith.mulf %325, %324 : vector<16x4xf32>
    %cst_98 = arith.constant 1.000000e+00 : f32
    %355 = vector.broadcast %cst_98 : f32 to vector<16x4xf32>
    %356 = arith.subf %355, %325 : vector<16x4xf32>
    %357 = arith.mulf %356, %353 : vector<16x4xf32>
    %358 = arith.addf %354, %357 : vector<16x4xf32>
    %c0_99 = arith.constant 0 : index
    %c0_100 = arith.constant 0 : index
    %359 = vector.load %arg9[%c0_99, %c0_100] : memref<16x4xf32, #tpu.memory_space<vmem>>, vector<16x4xf32>
    tpu.vector_store %arg9[%c0_99, %c0_100], %358 {strides = array<i32>} : memref<16x4xf32, #tpu.memory_space<vmem>>, vector<16x4xf32>,
    %360 = arith.subf %333, %324 : vector<16x4xf32>
    %361 = arith.subf %353, %338 : vector<16x4xf32>
    %362 = arith.mulf %360, %360 : vector<16x4xf32>
    %363 = arith.mulf %362, %325 : vector<16x4xf32>
    %364 = vector.shape_cast %363 : vector<16x4xf32> to vector<1x16x4xf32>
    %cst_101 = arith.constant dense<0.000000e+00> : vector<1xf32>
    %365 = vector.multi_reduction <add>, %364, %cst_101 [1, 2] : vector<1x16x4xf32> to vector<1xf32>
    %366 = vector.shape_cast %365 : vector<1xf32> to vector<1x1x1xf32>
    %367 = vector.extract %366[0, 0, 0] : f32 from vector<1x1x1xf32>
    %c0_102 = arith.constant 0 : index
    %368 = memref.load %arg10[%c0_102] : memref<3xf32, #tpu.memory_space<smem>>
    memref.store %367, %arg10[%c0_102] : memref<3xf32, #tpu.memory_space<smem>>
    %369 = vector.shape_cast %325 : vector<16x4xf32> to vector<1x16x4xf32>
    %cst_103 = arith.constant dense<0.000000e+00> : vector<1xf32>
    %370 = vector.multi_reduction <add>, %369, %cst_103 [1, 2] : vector<1x16x4xf32> to vector<1xf32>
    %371 = vector.shape_cast %370 : vector<1xf32> to vector<1x1x1xf32>
    %372 = vector.extract %371[0, 0, 0] : f32 from vector<1x1x1xf32>
    %c1_104 = arith.constant 1 : index
    %373 = memref.load %arg10[%c1_104] : memref<3xf32, #tpu.memory_space<smem>>
    memref.store %372, %arg10[%c1_104] : memref<3xf32, #tpu.memory_space<smem>>
    %374 = arith.mulf %361, %361 : vector<16x4xf32>
    %375 = vector.shape_cast %374 : vector<16x4xf32> to vector<1x16x4xf32>
    %cst_105 = arith.constant dense<0.000000e+00> : vector<1xf32>
    %376 = vector.multi_reduction <add>, %375, %cst_105 [1, 2] : vector<1x16x4xf32> to vector<1xf32>
    %377 = vector.shape_cast %376 : vector<1xf32> to vector<1x1x1xf32>
    %378 = vector.extract %377[0, 0, 0] : f32 from vector<1x1x1xf32>
    %c2_106 = arith.constant 2 : index
    %379 = memref.load %arg10[%c2_106] : memref<3xf32, #tpu.memory_space<smem>>
    memref.store %378, %arg10[%c2_106] : memref<3xf32, #tpu.memory_space<smem>>
    return
  }
}

</mosaic_0001>

<llo_original>
// kernel: tpu_custom_call.1
$region0: #{tpu_custom_call.1}
  #allocation0 [shape = 'u32[]', space=smem, size = 0x4, offset = 0x4, fixed_abs, tag = 'smem constant byte address 0x4 - core index']
  #allocation1 [shape = 'u32[144,128]{1,0:T(1,128)}', space=vmem, size = 0x12000, scoped, tag = 'internal scratch']
  #allocation2 [shape = 'f32[8,2,64]{2,1,0:T(2,128)}', space=vmem, size = 0x2000, scoped, tag = 'scratch operand']
  %s0 = inlined_call_operand.vmem [shape: f32[16,24], index: 0, kind: input, shape index: {}]
  %s1 = inlined_call_operand.vmem [shape: f32[24,192], index: 1, kind: input, shape index: {}]
  %s2 = inlined_call_operand.vmem [shape: f32[1,192], index: 2, kind: input, shape index: {}]
  %s3 = inlined_call_operand.hbm [shape: f32[64,192], index: 3, kind: input, shape index: {}]
  %s4 = inlined_call_operand.vmem [shape: f32[1,64], index: 4, kind: input, shape index: {}]
  %s5 = inlined_call_operand.vmem [shape: f32[64,4], index: 5, kind: input, shape index: {}]
  %s6 = inlined_call_operand.vmem [shape: f32[12,4], index: 6, kind: input, shape index: {}]
  %s7 = inlined_call_operand.vmem [shape: f32[4,4], index: 7, kind: input, shape index: {}]
  %s8 = inlined_call_operand.vmem [shape: f32[3,4], index: 8, kind: input, shape index: {}]
  %s9 = inlined_call_operand.vmem [shape: f32[16,4], index: 9, kind: output, shape index: {0}]
  %s10 = inlined_call_operand.hbm [shape: f32[3], index: 10, kind: output, shape index: {1}]
  %11 = xla_tuple %s9, %s10
  %s12 = sld [smem:[#allocation0]]
  $region58: #{tpu_custom_call.1} parent=0
    _
  %s14 = ssub.s32 1, %s12
  %s15 = scalar_select 0, %s14, %s12
  $region1: #{tpu_custom_call.1} parent=0
    #allocation3 [shape = 'u8[65536]{0}', space=vmem, size = 0x10000, scoped, tag = 'input window, operand 3, single buffered']
    #allocation4 [shape = 's32[1]{0}', space=sflag, size = 0x4, scoped, tag = 'scoped memory for tpu_custom_call.1']
    #allocation5 [shape = 's32[1]{0}', space=sflag, size = 0x4, scoped, tag = 'scoped memory for tpu_custom_call.1']
    #allocation6 [shape = 'u8[512]{0}', space=smem, size = 0x200, scoped, tag = 'output window, operand 1, single buffered']
    %16 = vsyncpa [#allocation4], 0
    %17 = vsyncpa [#allocation5], 0
    // Predicated region
    $region2: #{tpu_custom_call.1} parent=1 // pred_check
      _
    $region3: #{tpu_custom_call.1} parent=1 // pred_check_branch
      %19 = sbr.rel (0) target = $region5
    $region4: #{tpu_custom_call.1} parent=1 // pred_region
      _
    $region5: #{tpu_custom_call.1} parent=1 // pred_fallthru
      _
    // Predicated region
    $region6: #{tpu_custom_call.1} parent=1 // pred_check
      _
    $region7: #{tpu_custom_call.1} parent=1 // pred_check_branch
      %21 = sbr.rel (0) target = $region9
    $region8: #{tpu_custom_call.1} parent=1 // pred_region
      _
    $region9: #{tpu_custom_call.1} parent=1 // pred_fallthru
      _
    // Predicated region
    $region10: #{tpu_custom_call.1} parent=1 // pred_check
      _
    $region11: #{tpu_custom_call.1} parent=1 // pred_check_branch
      %23 = sbr.rel (0) target = $region13
    $region12: #{tpu_custom_call.1} parent=1 // pred_region
      _
    $region13: #{tpu_custom_call.1} parent=1 // pred_fallthru
      _
    // Predicated region
    $region14: #{tpu_custom_call.1} parent=1 // pred_check
      _
    $region15: #{tpu_custom_call.1} parent=1 // pred_check_branch
      %25 = sbr.rel (0) target = $region17
    $region16: #{tpu_custom_call.1} parent=1 // pred_region
      %s27 = ssub.s32 2048, 2048
      %28 = vsyncadd [#allocation4], %s27
      %s29 = sshll.u32 [#allocation3], 4
      %s30 = int_to_ptr.vmem [resolvable:$true] %s29
      %35 = dma.hbm_to_vmem [thread:$0]  %s3, 2048, %s30, [#allocation4], 256, 256, 16
    $region17: #{tpu_custom_call.1} parent=1 // pred_fallthru
      _
    // Predicated region
    $region18: #{tpu_custom_call.1} parent=1 // pred_check
      _
    $region19: #{tpu_custom_call.1} parent=1 // pred_check_branch
      %37 = sbr.rel (0) target = $region21
    $region20: #{tpu_custom_call.1} parent=1 // pred_region
      _
    $region21: #{tpu_custom_call.1} parent=1 // pred_fallthru
      _
    // Predicated region
    $region22: #{tpu_custom_call.1} parent=1 // pred_check
      _
    $region23: #{tpu_custom_call.1} parent=1 // pred_check_branch
      %39 = sbr.rel (0) target = $region25
    $region24: #{tpu_custom_call.1} parent=1 // pred_region
      _
    $region25: #{tpu_custom_call.1} parent=1 // pred_fallthru
      _
    // Predicated region
    $region26: #{tpu_custom_call.1} parent=1 // pred_check
      _
    $region27: #{tpu_custom_call.1} parent=1 // pred_check_branch
      %41 = sbr.rel (0) target = $region29
    $region28: #{tpu_custom_call.1} parent=1 // pred_region
      _
    $region29: #{tpu_custom_call.1} parent=1 // pred_fallthru
      _
    // Predicated region
    $region30: #{tpu_custom_call.1} parent=1 // pred_check
      _
    $region31: #{tpu_custom_call.1} parent=1 // pred_check_branch
      %43 = sbr.rel (0) target = $region33
    $region32: #{tpu_custom_call.1} parent=1 // pred_region
      _
    $region33: #{tpu_custom_call.1} parent=1 // pred_fallthru
      _
    // Predicated region
    $region34: #{tpu_custom_call.1} parent=1 // pred_check
      _
    $region35: #{tpu_custom_call.1} parent=1 // pred_check_branch
      %45 = sbr.rel (0) target = $region37
    $region36: #{tpu_custom_call.1} parent=1 // pred_region
      _
    $region37: #{tpu_custom_call.1} parent=1 // pred_fallthru
      _
    // Predicated region
    $region38: #{tpu_custom_call.1} parent=1 // pred_check
      _
    $region39: #{tpu_custom_call.1} parent=1 // pred_check_branch
      %47 = sbr.rel (0) target = $region41
    $region40: #{tpu_custom_call.1} parent=1 // pred_region
      %48 = dma.done [#allocation4], 2048
    $region41: #{tpu_custom_call.1} parent=1 // pred_fallthru
      _
    %v49 = vld [vmem:[%s0] sm:$0xff]
    %v50 = vld [vmem:[%s0 + $0x8] sm:$0xff]
    %v51 = vld [vmem:[%s1] sm:$0xff]
    %v52 = vld [vmem:[%s1 + $0x8] sm:$0xff]
    %v53 = vld [vmem:[%s1 + $0x10] sm:$0xff]
    %v54 = vld [vmem:[%s1 + $0x18] sm:$0xff]
    %v55 = vld [vmem:[%s1 + $0x20] sm:$0xff]
    %v56 = vld [vmem:[%s1 + $0x28] sm:$0xff]
    %v57 = vld [vmem:[%s2] sm:$0x3]
    %v59 = vlaneseq
    %v60 = vshrl.u32 %v59, 7
    %v61 = vsub.s32 0, %v60
    %v62 = vrot.slane %v57, %v61
    %v63 = vlaneseq
    %v64 = vshrl.u32 %v63, 7
    %v65 = vsub.s32 1, %v64
    %v66 = vrot.slane %v57, %v65
    %vm69 = vcmask 195584
    %v71 = vsel %vm69, %v49, 0
    %v74 = vsel %vm69, %v50, 0
    %76 = vmatprep.subr.mxu0 %v52
    %77 = vmatpush1.msra.mxu0 %v51
    %78 = vmatprep.subr.mxu0 %v54
    %79 = vmatpush1.msra.mxu0 %v53
    %80 = vmatprep.subr.mxu0 %v56
    %81 = vmatpush1.msra.mxu0 %v55
    %82 = vmatprep.subr.mxu0 0.0
    %83 = vmatpush1.msra.mxu0 0.0
    %84 = vmatprep.subr.mxu0 0.0
    %85 = vmatpush1.msra.mxu0 0.0
    %86 = vmatprep.subr.mxu0 0.0
    %87 = vmatpush1.msra.mxu0 0.0
    %88 = vmatprep.subr.mxu0 0.0
    %89 = vmatpush1.msra.mxu0 0.0
    %90 = vmatprep.subr.mxu0 0.0
    %91 = vmatpush1.msra.mxu0 0.0
    %92 = vmatprep.subr.mxu0 0.0
    %93 = vmatpush1.msra.mxu0 0.0
    %94 = vmatprep.subr.mxu0 0.0
    %95 = vmatpush1.msra.mxu0 0.0
    %96 = vmatprep.subr.mxu0 0.0
    %97 = vmatpush1.msra.mxu0 0.0
    %98 = vmatprep.subr.mxu0 0.0
    %99 = vmatpush1.msra.mxu0 0.0
    %100 = vmatprep.subr.mxu0 0.0
    %101 = vmatpush1.msra.mxu0 0.0
    %102 = vmatprep.subr.mxu0 0.0
    %103 = vmatpush1.msra.mxu0 0.0
    %104 = vmatprep.subr.mxu0 0.0
    %105 = vmatpush1.msra.mxu0 0.0
    %106 = vmatprep.subr.mxu0 0.0
    %107 = vmatpush1.msra.mxu0 0.0
    %108 = vmatprep.subr.mxu0 0.0
    %109 = vmatpush1.msra.mxu0 0.0
    %110 = vmatprep.subr.mxu0 0.0
    %111 = vmatpush1.msra.mxu0 0.0
    %112 = vmatprep.subr.mxu0 0.0
    %113 = vmatpush1.msra.mxu0 0.0
    %114 = vmatprep.subr.mxu0 0.0
    %115 = vmatpush1.msra.mxu0 0.0
    %116 = vmatprep.subr.mxu0 0.0
    %117 = vmatpush1.msra.mxu0 0.0
    %118 = vmatprep.subr.mxu0 0.0
    %119 = vmatpush1.msra.mxu0 0.0
    %120 = vmatprep.subr.mxu0 0.0
    %121 = vmatpush1.msra.mxu0 0.0
    %122 = vmatprep.subr.mxu0 0.0
    %123 = vmatpush1.msra.mxu0 0.0
    %124 = vmatprep.subr.mxu0 0.0
    %125 = vmatpush1.msra.mxu0 0.0
    %126 = vmatprep.subr.mxu0 0.0
    %127 = vmatpush1.msra.mxu0 0.0
    %128 = vmatprep.subr.mxu0 0.0
    %129 = vmatpush1.msra.mxu0 0.0
    %130 = vmatprep.subr.mxu0 0.0
    %131 = vmatpush1.msra.mxu0 0.0
    %132 = vmatprep.subr.mxu0 0.0
    %133 = vmatpush1.msra.mxu0 0.0
    %134 = vmatprep.subr.mxu0 0.0
    %135 = vmatpush1.msra.mxu0 0.0
    %136 = vmatprep.subr.mxu0 0.0
    %137 = vmatpush1.msra.mxu0 0.0
    %138 = vmatprep.subr.mxu0 0.0
    %139 = vmatpush1.msra.mxu0 0.0
    %140 = vmatprep.mubr.f32.mxu0 0.0
    %141 = vmatmul.mubr.f32.gmra.mrb[0].mxu0 %v71
    %v142 = vpop.f32.mrb[0].mxu0
    %v143 = vadd.f32 %v62, %v142
    %v144 = vpop.f32.mrb[0].mxu0
    %v145 = vadd.f32 %v66, %v144
    %146 = vmatprep.mubr.f32.mxu0 0.0
    %147 = vmatmul.mubr.f32.gmra.mrb[0].mxu0 %v74
    %v148 = vpop.f32.mrb[0].mxu0
    %v149 = vadd.f32 %v62, %v148
    %v150 = vpop.f32.mrb[0].mxu0
    %v151 = vadd.f32 %v66, %v150
    %152 = vdwg.mxu0
    %v157 = vcombine.low %v143, %v145
    %v158 = vcombine.high %v143, %v145
    %v160 = vunpack.c.l.s4 1983009808
    %v161 = vunpack.c.0.s8 %v160
    %v162 = vlaneseq
    %v163 = vshrl.u32 %v162, 7
    %v164 = vsub.s32 %v161, %v163
    %v165 = vrot.slane %v157, %v164
    %v167 = vunpack.c.l.s4 1983009808
    %v168 = vunpack.c.0.s8 %v167
    %v169 = vlaneseq
    %v170 = vshrl.u32 %v169, 7
    %v171 = vsub.s32 %v168, %v170
    %v172 = vrot.slane %v158, %v171
    %v173 = vcombine.high %v165, %v165
    %v174 = vcombine.high %v172, %v172
    %v175 = vcombine.low %v149, %v151
    %v176 = vcombine.high %v149, %v151
    %v178 = vunpack.c.l.s4 1983009808
    %v179 = vunpack.c.0.s8 %v178
    %v180 = vlaneseq
    %v181 = vshrl.u32 %v180, 7
    %v182 = vsub.s32 %v179, %v181
    %v183 = vrot.slane %v175, %v182
    %v185 = vunpack.c.l.s4 1983009808
    %v186 = vunpack.c.0.s8 %v185
    %v187 = vlaneseq
    %v188 = vshrl.u32 %v187, 7
    %v189 = vsub.s32 %v186, %v188
    %v190 = vrot.slane %v176, %v189
    %v191 = vcombine.high %v183, %v183
    %v192 = vcombine.high %v190, %v190
    %v201 = vld [vmem:[#allocation3] sm:$0xff]
    %v202 = vld [vmem:[#allocation3 + $0x8] sm:$0xff]
    %v203 = vld [vmem:[#allocation3 + $0x10] sm:$0xff]
    %v204 = vld [vmem:[#allocation3 + $0x18] sm:$0xff]
    %v205 = vld [vmem:[#allocation3 + $0x20] sm:$0xff]
    %v206 = vld [vmem:[#allocation3 + $0x28] sm:$0xff]
    %v207 = vld [vmem:[#allocation3 + $0x30] sm:$0xff]
    %v208 = vld [vmem:[#allocation3 + $0x38] sm:$0xff]
    %v209 = vld [vmem:[#allocation3 + $0x40] sm:$0xff]
    %v210 = vld [vmem:[#allocation3 + $0x48] sm:$0xff]
    %v211 = vld [vmem:[#allocation3 + $0x50] sm:$0xff]
    %v212 = vld [vmem:[#allocation3 + $0x58] sm:$0xff]
    %v213 = vld [vmem:[#allocation3 + $0x60] sm:$0xff]
    %v214 = vld [vmem:[#allocation3 + $0x68] sm:$0xff]
    %v215 = vld [vmem:[#allocation3 + $0x70] sm:$0xff]
    %v216 = vld [vmem:[#allocation3 + $0x78] sm:$0xff]
    %v217 = vld [vmem:[%s4] sm:$0x1]
    %vm218 = vcmask 523264
    %v220 = vsel %vm218, 0.0, 0
    %222 = vmatprep.subr.mxu0 %v202
    %223 = vmatpush1.msra.mxu0 %v201
    %224 = vmatprep.subr.mxu0 %v204
    %225 = vmatpush1.msra.mxu0 %v203
    %226 = vmatprep.subr.mxu0 %v206
    %227 = vmatpush1.msra.mxu0 %v205
    %228 = vmatprep.subr.mxu0 %v208
    %229 = vmatpush1.msra.mxu0 %v207
    %230 = vmatprep.subr.mxu0 %v210
    %231 = vmatpush1.msra.mxu0 %v209
    %232 = vmatprep.subr.mxu0 %v212
    %233 = vmatpush1.msra.mxu0 %v211
    %234 = vmatprep.subr.mxu0 %v214
    %235 = vmatpush1.msra.mxu0 %v213
    %236 = vmatprep.subr.mxu0 %v216
    %237 = vmatpush1.msra.mxu0 %v215
    %238 = vmatprep.subr.mxu0 0.0
    %239 = vmatpush1.msra.mxu0 0.0
    %240 = vmatprep.subr.mxu0 0.0
    %241 = vmatpush1.msra.mxu0 0.0
    %242 = vmatprep.subr.mxu0 0.0
    %243 = vmatpush1.msra.mxu0 0.0
    %244 = vmatprep.subr.mxu0 0.0
    %245 = vmatpush1.msra.mxu0 0.0
    %246 = vmatprep.subr.mxu0 0.0
    %247 = vmatpush1.msra.mxu0 0.0
    %248 = vmatprep.subr.mxu0 0.0
    %249 = vmatpush1.msra.mxu0 0.0
    %250 = vmatprep.subr.mxu0 0.0
    %251 = vmatpush1.msra.mxu0 0.0
    %252 = vmatprep.subr.mxu0 0.0
    %253 = vmatpush1.msra.mxu0 0.0
    %254 = vmatprep.subr.mxu0 0.0
    %255 = vmatpush1.msra.mxu0 0.0
    %256 = vmatprep.subr.mxu0 0.0
    %257 = vmatpush1.msra.mxu0 0.0
    %258 = vmatprep.subr.mxu0 0.0
    %259 = vmatpush1.msra.mxu0 0.0
    %260 = vmatprep.subr.mxu0 0.0
    %261 = vmatpush1.msra.mxu0 0.0
    %262 = vmatprep.subr.mxu0 0.0
    %263 = vmatpush1.msra.mxu0 0.0
    %264 = vmatprep.subr.mxu0 0.0
    %265 = vmatpush1.msra.mxu0 0.0
    %266 = vmatprep.subr.mxu0 0.0
    %267 = vmatpush1.msra.mxu0 0.0
    %268 = vmatprep.subr.mxu0 0.0
    %269 = vmatpush1.msra.mxu0 0.0
    %270 = vmatprep.subr.mxu0 0.0
    %271 = vmatpush1.msra.mxu0 0.0
    %272 = vmatprep.subr.mxu0 0.0
    %273 = vmatpush1.msra.mxu0 0.0
    %274 = vmatprep.subr.mxu0 0.0
    %275 = vmatpush1.msra.mxu0 0.0
    %276 = vmatprep.subr.mxu0 0.0
    %277 = vmatpush1.msra.mxu0 0.0
    %278 = vmatprep.subr.mxu0 0.0
    %279 = vmatpush1.msra.mxu0 0.0
    %280 = vmatprep.subr.mxu0 0.0
    %281 = vmatpush1.msra.mxu0 0.0
    %282 = vmatprep.subr.mxu0 0.0
    %283 = vmatpush1.msra.mxu0 0.0
    %284 = vmatprep.subr.mxu0 0.0
    %285 = vmatpush1.msra.mxu0 0.0
    %286 = vmatprep.mubr.f32.mxu0 0.0
    %287 = vmatmul.mubr.f32.gmra.mrb[0].mxu0 %v220
    %v288 = vpop.f32.mrb[0].mxu0
    %v289 = vadd.f32 0.0, %v288
    %v290 = vpop.f32.mrb[0].mxu0
    %v291 = vadd.f32 0.0, %v290
    %292 = vdwg.mxu0
    %v293 = vadd.f32 %v165, %v289
    %v294 = vxor.u32 %v293, 2147483648
    %v295 = vmul.f32 %v294, 1.442695
    %v296 = vpow.pop %v295
    %v297 = vadd.f32 %v296, 1.0
    %v298 = vrcp.pop %v297
    %v299 = vmul.f32 1.0, %v298
    %v301 = vlaneseq
    %v302 = vshrl.u32 %v301, 7
    %v303 = vsub.s32 0, %v302
    %v304 = vrot.slane %v217, %v303
    %v306 = vadd.f32 %v291, %v304
    %v307 = vmul.f32 %v299, %v306
    %v308 = vrot.slane %v165, 2
    %v310 = vadd.f32 %v308, %v307
    %v311 = vtanh.pop %v310
    %v312 = vsub.f32 1.0, %v299
    %314 = vrot.lane.b32.xlu0 %v311, 64
    %v315 = vpop.permute.xlu0 %314
    %v317 = vmul.f32 %v312, %v315
    %v318 = vmul.f32 %v299, 0.0
    %v319 = vadd.f32 %v317, %v318
    %v322 = vunpack.c.l.s4 1983009808
    %v323 = vunpack.c.0.s8 %v322
    %v324 = vlaneseq
    %v325 = vshrl.u32 %v324, 7
    %v326 = vsub.s32 %v323, %v325
    %v327 = vrot.slane %v319, %v326
    %328 = vrot.lane.b32.xlu0 %v327, 64
    %v329 = vpop.permute.xlu0 %328
    %vm331 = vcmask 254976
    %332 = vst.msk [vmem:[#allocation2] sm:$0x3] %vm331, %v329
    %s333 = scalar_lea.vmem [#allocation2], 14
    %vm334 = vcmask 517376
    %335 = vst.msk [vmem:[%s333] sm:$0x3] %vm334, %v329
    %v336 = vsel %vm218, %v329, 0
    %338 = vmatprep.subr.mxu0 %v202
    %339 = vmatpush1.msra.mxu0 %v201
    %340 = vmatprep.subr.mxu0 %v204
    %341 = vmatpush1.msra.mxu0 %v203
    %342 = vmatprep.subr.mxu0 %v206
    %343 = vmatpush1.msra.mxu0 %v205
    %344 = vmatprep.subr.mxu0 %v208
    %345 = vmatpush1.msra.mxu0 %v207
    %346 = vmatprep.subr.mxu0 %v210
    %347 = vmatpush1.msra.mxu0 %v209
    %348 = vmatprep.subr.mxu0 %v212
    %349 = vmatpush1.msra.mxu0 %v211
    %350 = vmatprep.subr.mxu0 %v214
    %351 = vmatpush1.msra.mxu0 %v213
    %352 = vmatprep.subr.mxu0 %v216
    %353 = vmatpush1.msra.mxu0 %v215
    %354 = vmatprep.subr.mxu0 0.0
    %355 = vmatpush1.msra.mxu0 0.0
    %356 = vmatprep.subr.mxu0 0.0
    %357 = vmatpush1.msra.mxu0 0.0
    %358 = vmatprep.subr.mxu0 0.0
    %359 = vmatpush1.msra.mxu0 0.0
    %360 = vmatprep.subr.mxu0 0.0
    %361 = vmatpush1.msra.mxu0 0.0
    %362 = vmatprep.subr.mxu0 0.0
    %363 = vmatpush1.msra.mxu0 0.0
    %364 = vmatprep.subr.mxu0 0.0
    %365 = vmatpush1.msra.mxu0 0.0
    %366 = vmatprep.subr.mxu0 0.0
    %367 = vmatpush1.msra.mxu0 0.0
    %368 = vmatprep.subr.mxu0 0.0
    %369 = vmatpush1.msra.mxu0 0.0
    %370 = vmatprep.subr.mxu0 0.0
    %371 = vmatpush1.msra.mxu0 0.0
    %372 = vmatprep.subr.mxu0 0.0
    %373 = vmatpush1.msra.mxu0 0.0
    %374 = vmatprep.subr.mxu0 0.0
    %375 = vmatpush1.msra.mxu0 0.0
    %376 = vmatprep.subr.mxu0 0.0
    %377 = vmatpush1.msra.mxu0 0.0
    %378 = vmatprep.subr.mxu0 0.0
    %379 = vmatpush1.msra.mxu0 0.0
    %380 = vmatprep.subr.mxu0 0.0
    %381 = vmatpush1.msra.mxu0 0.0
    %382 = vmatprep.subr.mxu0 0.0
    %383 = vmatpush1.msra.mxu0 0.0
    %384 = vmatprep.subr.mxu0 0.0
    %385 = vmatpush1.msra.mxu0 0.0
    %386 = vmatprep.subr.mxu0 0.0
    %387 = vmatpush1.msra.mxu0 0.0
    %388 = vmatprep.subr.mxu0 0.0
    %389 = vmatpush1.msra.mxu0 0.0
    %390 = vmatprep.subr.mxu0 0.0
    %391 = vmatpush1.msra.mxu0 0.0
    %392 = vmatprep.subr.mxu0 0.0
    %393 = vmatpush1.msra.mxu0 0.0
    %394 = vmatprep.subr.mxu0 0.0
    %395 = vmatpush1.msra.mxu0 0.0
    %396 = vmatprep.subr.mxu0 0.0
    %397 = vmatpush1.msra.mxu0 0.0
    %398 = vmatprep.subr.mxu0 0.0
    %399 = vmatpush1.msra.mxu0 0.0
    %400 = vmatprep.subr.mxu0 0.0
    %401 = vmatpush1.msra.mxu0 0.0
    %402 = vmatprep.mubr.f32.mxu0 0.0
    %403 = vmatmul.mubr.f32.gmra.mrb[0].mxu0 %v336
    %v404 = vpop.f32.mrb[0].mxu0
    %v405 = vadd.f32 0.0, %v404
    %v406 = vpop.f32.mrb[0].mxu0
    %v407 = vadd.f32 0.0, %v406
    %408 = vdwg.mxu0
    %v409 = vadd.f32 %v173, %v405
    %v410 = vxor.u32 %v409, 2147483648
    %v411 = vmul.f32 %v410, 1.442695
    %v412 = vpow.pop %v411
    %v413 = vadd.f32 %v412, 1.0
    %v414 = vrcp.pop %v413
    %v415 = vmul.f32 1.0, %v414
    %v416 = vadd.f32 %v407, %v304
    %v417 = vmul.f32 %v415, %v416
    %v418 = vrot.slane %v173, 2
    %v420 = vadd.f32 %v418, %v417
    %v421 = vtanh.pop %v420
    %v422 = vsub.f32 1.0, %v415
    %424 = vrot.lane.b32.xlu0 %v421, 64
    %v425 = vpop.permute.xlu0 %424
    %v427 = vmul.f32 %v422, %v425
    %v428 = vmul.f32 %v415, %v319
    %v429 = vadd.f32 %v427, %v428
    %v432 = vunpack.c.l.s4 1983009808
    %v433 = vunpack.c.0.s8 %v432
    %v434 = vlaneseq
    %v435 = vshrl.u32 %v434, 7
    %v436 = vsub.s32 %v433, %v435
    %v437 = vrot.slane %v429, %v436
    %438 = vrot.lane.b32.xlu0 %v437, 64
    %v439 = vpop.permute.xlu0 %438
    %s441 = scalar_lea.vmem [#allocation2], 2
    %442 = vst.msk [vmem:[%s441] sm:$0x3] %vm331, %v439
    %s443 = scalar_lea.vmem [#allocation2], 12
    %444 = vst.msk [vmem:[%s443] sm:$0x3] %vm334, %v439
    %v445 = vsel %vm218, %v439, 0
    %447 = vmatprep.subr.mxu0 %v202
    %448 = vmatpush1.msra.mxu0 %v201
    %449 = vmatprep.subr.mxu0 %v204
    %450 = vmatpush1.msra.mxu0 %v203
    %451 = vmatprep.subr.mxu0 %v206
    %452 = vmatpush1.msra.mxu0 %v205
    %453 = vmatprep.subr.mxu0 %v208
    %454 = vmatpush1.msra.mxu0 %v207
    %455 = vmatprep.subr.mxu0 %v210
    %456 = vmatpush1.msra.mxu0 %v209
    %457 = vmatprep.subr.mxu0 %v212
    %458 = vmatpush1.msra.mxu0 %v211
    %459 = vmatprep.subr.mxu0 %v214
    %460 = vmatpush1.msra.mxu0 %v213
    %461 = vmatprep.subr.mxu0 %v216
    %462 = vmatpush1.msra.mxu0 %v215
    %463 = vmatprep.subr.mxu0 0.0
    %464 = vmatpush1.msra.mxu0 0.0
    %465 = vmatprep.subr.mxu0 0.0
    %466 = vmatpush1.msra.mxu0 0.0
    %467 = vmatprep.subr.mxu0 0.0
    %468 = vmatpush1.msra.mxu0 0.0
    %469 = vmatprep.subr.mxu0 0.0
    %470 = vmatpush1.msra.mxu0 0.0
    %471 = vmatprep.subr.mxu0 0.0
    %472 = vmatpush1.msra.mxu0 0.0
    %473 = vmatprep.subr.mxu0 0.0
    %474 = vmatpush1.msra.mxu0 0.0
    %475 = vmatprep.subr.mxu0 0.0
    %476 = vmatpush1.msra.mxu0 0.0
    %477 = vmatprep.subr.mxu0 0.0
    %478 = vmatpush1.msra.mxu0 0.0
    %479 = vmatprep.subr.mxu0 0.0
    %480 = vmatpush1.msra.mxu0 0.0
    %481 = vmatprep.subr.mxu0 0.0
    %482 = vmatpush1.msra.mxu0 0.0
    %483 = vmatprep.subr.mxu0 0.0
    %484 = vmatpush1.msra.mxu0 0.0
    %485 = vmatprep.subr.mxu0 0.0
    %486 = vmatpush1.msra.mxu0 0.0
    %487 = vmatprep.subr.mxu0 0.0
    %488 = vmatpush1.msra.mxu0 0.0
    %489 = vmatprep.subr.mxu0 0.0
    %490 = vmatpush1.msra.mxu0 0.0
    %491 = vmatprep.subr.mxu0 0.0
    %492 = vmatpush1.msra.mxu0 0.0
    %493 = vmatprep.subr.mxu0 0.0
    %494 = vmatpush1.msra.mxu0 0.0
    %495 = vmatprep.subr.mxu0 0.0
    %496 = vmatpush1.msra.mxu0 0.0
    %497 = vmatprep.subr.mxu0 0.0
    %498 = vmatpush1.msra.mxu0 0.0
    %499 = vmatprep.subr.mxu0 0.0
    %500 = vmatpush1.msra.mxu0 0.0
    %501 = vmatprep.subr.mxu0 0.0
    %502 = vmatpush1.msra.mxu0 0.0
    %503 = vmatprep.subr.mxu0 0.0
    %504 = vmatpush1.msra.mxu0 0.0
    %505 = vmatprep.subr.mxu0 0.0
    %506 = vmatpush1.msra.mxu0 0.0
    %507 = vmatprep.subr.mxu0 0.0
    %508 = vmatpush1.msra.mxu0 0.0
    %509 = vmatprep.subr.mxu0 0.0
    %510 = vmatpush1.msra.mxu0 0.0
    %511 = vmatprep.mubr.f32.mxu0 0.0
    %512 = vmatmul.mubr.f32.gmra.mrb[0].mxu0 %v445
    %v513 = vpop.f32.mrb[0].mxu0
    %v514 = vadd.f32 0.0, %v513
    %v515 = vpop.f32.mrb[0].mxu0
    %v516 = vadd.f32 0.0, %v515
    %517 = vdwg.mxu0
    %v518 = vadd.f32 %v172, %v514
    %v519 = vxor.u32 %v518, 2147483648
    %v520 = vmul.f32 %v519, 1.442695
    %v521 = vpow.pop %v520
    %v522 = vadd.f32 %v521, 1.0
    %v523 = vrcp.pop %v522
    %v524 = vmul.f32 1.0, %v523
    %v525 = vadd.f32 %v516, %v304
    %v526 = vmul.f32 %v524, %v525
    %v527 = vrot.slane %v172, 2
    %v529 = vadd.f32 %v527, %v526
    %v530 = vtanh.pop %v529
    %v531 = vsub.f32 1.0, %v524
    %533 = vrot.lane.b32.xlu0 %v530, 64
    %v534 = vpop.permute.xlu0 %533
    %v536 = vmul.f32 %v531, %v534
    %v537 = vmul.f32 %v524, %v429
    %v538 = vadd.f32 %v536, %v537
    %v541 = vunpack.c.l.s4 1983009808
    %v542 = vunpack.c.0.s8 %v541
    %v543 = vlaneseq
    %v544 = vshrl.u32 %v543, 7
    %v545 = vsub.s32 %v542, %v544
    %v546 = vrot.slane %v538, %v545
    %547 = vrot.lane.b32.xlu0 %v546, 64
    %v548 = vpop.permute.xlu0 %547
    %s550 = scalar_lea.vmem [#allocation2], 4
    %551 = vst.msk [vmem:[%s550] sm:$0x3] %vm331, %v548
    %s552 = scalar_lea.vmem [#allocation2], 10
    %553 = vst.msk [vmem:[%s552] sm:$0x3] %vm334, %v548
    %v554 = vsel %vm218, %v548, 0
    %556 = vmatprep.subr.mxu0 %v202
    %557 = vmatpush1.msra.mxu0 %v201
    %558 = vmatprep.subr.mxu0 %v204
    %559 = vmatpush1.msra.mxu0 %v203
    %560 = vmatprep.subr.mxu0 %v206
    %561 = vmatpush1.msra.mxu0 %v205
    %562 = vmatprep.subr.mxu0 %v208
    %563 = vmatpush1.msra.mxu0 %v207
    %564 = vmatprep.subr.mxu0 %v210
    %565 = vmatpush1.msra.mxu0 %v209
    %566 = vmatprep.subr.mxu0 %v212
    %567 = vmatpush1.msra.mxu0 %v211
    %568 = vmatprep.subr.mxu0 %v214
    %569 = vmatpush1.msra.mxu0 %v213
    %570 = vmatprep.subr.mxu0 %v216
    %571 = vmatpush1.msra.mxu0 %v215
    %572 = vmatprep.subr.mxu0 0.0
    %573 = vmatpush1.msra.mxu0 0.0
    %574 = vmatprep.subr.mxu0 0.0
    %575 = vmatpush1.msra.mxu0 0.0
    %576 = vmatprep.subr.mxu0 0.0
    %577 = vmatpush1.msra.mxu0 0.0
    %578 = vmatprep.subr.mxu0 0.0
    %579 = vmatpush1.msra.mxu0 0.0
    %580 = vmatprep.subr.mxu0 0.0
    %581 = vmatpush1.msra.mxu0 0.0
    %582 = vmatprep.subr.mxu0 0.0
    %583 = vmatpush1.msra.mxu0 0.0
    %584 = vmatprep.subr.mxu0 0.0
    %585 = vmatpush1.msra.mxu0 0.0
    %586 = vmatprep.subr.mxu0 0.0
    %587 = vmatpush1.msra.mxu0 0.0
    %588 = vmatprep.subr.mxu0 0.0
    %589 = vmatpush1.msra.mxu0 0.0
    %590 = vmatprep.subr.mxu0 0.0
    %591 = vmatpush1.msra.mxu0 0.0
    %592 = vmatprep.subr.mxu0 0.0
    %593 = vmatpush1.msra.mxu0 0.0
    %594 = vmatprep.subr.mxu0 0.0
    %595 = vmatpush1.msra.mxu0 0.0
    %596 = vmatprep.subr.mxu0 0.0
    %597 = vmatpush1.msra.mxu0 0.0
    %598 = vmatprep.subr.mxu0 0.0
    %599 = vmatpush1.msra.mxu0 0.0
    %600 = vmatprep.subr.mxu0 0.0
    %601 = vmatpush1.msra.mxu0 0.0
    %602 = vmatprep.subr.mxu0 0.0
    %603 = vmatpush1.msra.mxu0 0.0
    %604 = vmatprep.subr.mxu0 0.0
    %605 = vmatpush1.msra.mxu0 0.0
    %606 = vmatprep.subr.mxu0 0.0
    %607 = vmatpush1.msra.mxu0 0.0
    %608 = vmatprep.subr.mxu0 0.0
    %609 = vmatpush1.msra.mxu0 0.0
    %610 = vmatprep.subr.mxu0 0.0
    %611 = vmatpush1.msra.mxu0 0.0
    %612 = vmatprep.subr.mxu0 0.0
    %613 = vmatpush1.msra.mxu0 0.0
    %614 = vmatprep.subr.mxu0 0.0
    %615 = vmatpush1.msra.mxu0 0.0
    %616 = vmatprep.subr.mxu0 0.0
    %617 = vmatpush1.msra.mxu0 0.0
    %618 = vmatprep.subr.mxu0 0.0
    %619 = vmatpush1.msra.mxu0 0.0
    %620 = vmatprep.mubr.f32.mxu0 0.0
    %621 = vmatmul.mubr.f32.gmra.mrb[0].mxu0 %v554
    %v622 = vpop.f32.mrb[0].mxu0
    %v623 = vadd.f32 0.0, %v622
    %v624 = vpop.f32.mrb[0].mxu0
    %v625 = vadd.f32 0.0, %v624
    %626 = vdwg.mxu0
    %v627 = vadd.f32 %v174, %v623
    %v628 = vxor.u32 %v627, 2147483648
    %v629 = vmul.f32 %v628, 1.442695
    %v630 = vpow.pop %v629
    %v631 = vadd.f32 %v630, 1.0
    %v632 = vrcp.pop %v631
    %v633 = vmul.f32 1.0, %v632
    %v634 = vadd.f32 %v625, %v304
    %v635 = vmul.f32 %v633, %v634
    %v636 = vrot.slane %v174, 2
    %v638 = vadd.f32 %v636, %v635
    %v639 = vtanh.pop %v638
    %v640 = vsub.f32 1.0, %v633
    %642 = vrot.lane.b32.xlu0 %v639, 64
    %v643 = vpop.permute.xlu0 %642
    %v645 = vmul.f32 %v640, %v643
    %v646 = vmul.f32 %v633, %v538
    %v647 = vadd.f32 %v645, %v646
    %v650 = vunpack.c.l.s4 1983009808
    %v651 = vunpack.c.0.s8 %v650
    %v652 = vlaneseq
    %v653 = vshrl.u32 %v652, 7
    %v654 = vsub.s32 %v651, %v653
    %v655 = vrot.slane %v647, %v654
    %656 = vrot.lane.b32.xlu0 %v655, 64
    %v657 = vpop.permute.xlu0 %656
    %s659 = scalar_lea.vmem [#allocation2], 6
    %660 = vst.msk [vmem:[%s659] sm:$0x3] %vm331, %v657
    %s661 = scalar_lea.vmem [#allocation2], 8
    %662 = vst.msk [vmem:[%s661] sm:$0x3] %vm334, %v657
    %v663 = vsel %vm218, %v657, 0
    %665 = vmatprep.subr.mxu0 %v202
    %666 = vmatpush1.msra.mxu0 %v201
    %667 = vmatprep.subr.mxu0 %v204
    %668 = vmatpush1.msra.mxu0 %v203
    %669 = vmatprep.subr.mxu0 %v206
    %670 = vmatpush1.msra.mxu0 %v205
    %671 = vmatprep.subr.mxu0 %v208
    %672 = vmatpush1.msra.mxu0 %v207
    %673 = vmatprep.subr.mxu0 %v210
    %674 = vmatpush1.msra.mxu0 %v209
    %675 = vmatprep.subr.mxu0 %v212
    %676 = vmatpush1.msra.mxu0 %v211
    %677 = vmatprep.subr.mxu0 %v214
    %678 = vmatpush1.msra.mxu0 %v213
    %679 = vmatprep.subr.mxu0 %v216
    %680 = vmatpush1.msra.mxu0 %v215
    %681 = vmatprep.subr.mxu0 0.0
    %682 = vmatpush1.msra.mxu0 0.0
    %683 = vmatprep.subr.mxu0 0.0
    %684 = vmatpush1.msra.mxu0 0.0
    %685 = vmatprep.subr.mxu0 0.0
    %686 = vmatpush1.msra.mxu0 0.0
    %687 = vmatprep.subr.mxu0 0.0
    %688 = vmatpush1.msra.mxu0 0.0
    %689 = vmatprep.subr.mxu0 0.0
    %690 = vmatpush1.msra.mxu0 0.0
    %691 = vmatprep.subr.mxu0 0.0
    %692 = vmatpush1.msra.mxu0 0.0
    %693 = vmatprep.subr.mxu0 0.0
    %694 = vmatpush1.msra.mxu0 0.0
    %695 = vmatprep.subr.mxu0 0.0
    %696 = vmatpush1.msra.mxu0 0.0
    %697 = vmatprep.subr.mxu0 0.0
    %698 = vmatpush1.msra.mxu0 0.0
    %699 = vmatprep.subr.mxu0 0.0
    %700 = vmatpush1.msra.mxu0 0.0
    %701 = vmatprep.subr.mxu0 0.0
    %702 = vmatpush1.msra.mxu0 0.0
    %703 = vmatprep.subr.mxu0 0.0
    %704 = vmatpush1.msra.mxu0 0.0
    %705 = vmatprep.subr.mxu0 0.0
    %706 = vmatpush1.msra.mxu0 0.0
    %707 = vmatprep.subr.mxu0 0.0
    %708 = vmatpush1.msra.mxu0 0.0
    %709 = vmatprep.subr.mxu0 0.0
    %710 = vmatpush1.msra.mxu0 0.0
    %711 = vmatprep.subr.mxu0 0.0
    %712 = vmatpush1.msra.mxu0 0.0
    %713 = vmatprep.subr.mxu0 0.0
    %714 = vmatpush1.msra.mxu0 0.0
    %715 = vmatprep.subr.mxu0 0.0
    %716 = vmatpush1.msra.mxu0 0.0
    %717 = vmatprep.subr.mxu0 0.0
    %718 = vmatpush1.msra.mxu0 0.0
    %719 = vmatprep.subr.mxu0 0.0
    %720 = vmatpush1.msra.mxu0 0.0
    %721 = vmatprep.subr.mxu0 0.0
    %722 = vmatpush1.msra.mxu0 0.0
    %723 = vmatprep.subr.mxu0 0.0
    %724 = vmatpush1.msra.mxu0 0.0
    %725 = vmatprep.subr.mxu0 0.0
    %726 = vmatpush1.msra.mxu0 0.0
    %727 = vmatprep.subr.mxu0 0.0
    %728 = vmatpush1.msra.mxu0 0.0
    %729 = vmatprep.mubr.f32.mxu0 0.0
    %730 = vmatmul.mubr.f32.gmra.mrb[0].mxu0 %v663
    %v731 = vpop.f32.mrb[0].mxu0
    %v732 = vadd.f32 0.0, %v731
    %v733 = vpop.f32.mrb[0].mxu0
    %v734 = vadd.f32 0.0, %v733
    %735 = vdwg.mxu0
    %v736 = vadd.f32 %v183, %v732
    %v737 = vxor.u32 %v736, 2147483648
    %v738 = vmul.f32 %v737, 1.442695
    %v739 = vpow.pop %v738
    %v740 = vadd.f32 %v739, 1.0
    %v741 = vrcp.pop %v740
    %v742 = vmul.f32 1.0, %v741
    %v743 = vadd.f32 %v734, %v304
    %v744 = vmul.f32 %v742, %v743
    %v745 = vrot.slane %v183, 2
    %v747 = vadd.f32 %v745, %v744
    %v748 = vtanh.pop %v747
    %v749 = vsub.f32 1.0, %v742
    %751 = vrot.lane.b32.xlu0 %v748, 64
    %v752 = vpop.permute.xlu0 %751
    %v754 = vmul.f32 %v749, %v752
    %v755 = vmul.f32 %v742, %v647
    %v756 = vadd.f32 %v754, %v755
    %v759 = vunpack.c.l.s4 1983009808
    %v760 = vunpack.c.0.s8 %v759
    %v761 = vlaneseq
    %v762 = vshrl.u32 %v761, 7
    %v763 = vsub.s32 %v760, %v762
    %v764 = vrot.slane %v756, %v763
    %765 = vrot.lane.b32.xlu0 %v764, 64
    %v766 = vpop.permute.xlu0 %765
    %768 = vst.msk [vmem:[%s661] sm:$0x3] %vm331, %v766
    %769 = vst.msk [vmem:[%s659] sm:$0x3] %vm334, %v766
    %v770 = vsel %vm218, %v766, 0
    %772 = vmatprep.subr.mxu0 %v202
    %773 = vmatpush1.msra.mxu0 %v201
    %774 = vmatprep.subr.mxu0 %v204
    %775 = vmatpush1.msra.mxu0 %v203
    %776 = vmatprep.subr.mxu0 %v206
    %777 = vmatpush1.msra.mxu0 %v205
    %778 = vmatprep.subr.mxu0 %v208
    %779 = vmatpush1.msra.mxu0 %v207
    %780 = vmatprep.subr.mxu0 %v210
    %781 = vmatpush1.msra.mxu0 %v209
    %782 = vmatprep.subr.mxu0 %v212
    %783 = vmatpush1.msra.mxu0 %v211
    %784 = vmatprep.subr.mxu0 %v214
    %785 = vmatpush1.msra.mxu0 %v213
    %786 = vmatprep.subr.mxu0 %v216
    %787 = vmatpush1.msra.mxu0 %v215
    %788 = vmatprep.subr.mxu0 0.0
    %789 = vmatpush1.msra.mxu0 0.0
    %790 = vmatprep.subr.mxu0 0.0
    %791 = vmatpush1.msra.mxu0 0.0
    %792 = vmatprep.subr.mxu0 0.0
    %793 = vmatpush1.msra.mxu0 0.0
    %794 = vmatprep.subr.mxu0 0.0
    %795 = vmatpush1.msra.mxu0 0.0
    %796 = vmatprep.subr.mxu0 0.0
    %797 = vmatpush1.msra.mxu0 0.0
    %798 = vmatprep.subr.mxu0 0.0
    %799 = vmatpush1.msra.mxu0 0.0
    %800 = vmatprep.subr.mxu0 0.0
    %801 = vmatpush1.msra.mxu0 0.0
    %802 = vmatprep.subr.mxu0 0.0
    %803 = vmatpush1.msra.mxu0 0.0
    %804 = vmatprep.subr.mxu0 0.0
    %805 = vmatpush1.msra.mxu0 0.0
    %806 = vmatprep.subr.mxu0 0.0
    %807 = vmatpush1.msra.mxu0 0.0
    %808 = vmatprep.subr.mxu0 0.0
    %809 = vmatpush1.msra.mxu0 0.0
    %810 = vmatprep.subr.mxu0 0.0
    %811 = vmatpush1.msra.mxu0 0.0
    %812 = vmatprep.subr.mxu0 0.0
    %813 = vmatpush1.msra.mxu0 0.0
    %814 = vmatprep.subr.mxu0 0.0
    %815 = vmatpush1.msra.mxu0 0.0
    %816 = vmatprep.subr.mxu0 0.0
    %817 = vmatpush1.msra.mxu0 0.0
    %818 = vmatprep.subr.mxu0 0.0
    %819 = vmatpush1.msra.mxu0 0.0
    %820 = vmatprep.subr.mxu0 0.0
    %821 = vmatpush1.msra.mxu0 0.0
    %822 = vmatprep.subr.mxu0 0.0
    %823 = vmatpush1.msra.mxu0 0.0
    %824 = vmatprep.subr.mxu0 0.0
    %825 = vmatpush1.msra.mxu0 0.0
    %826 = vmatprep.subr.mxu0 0.0
    %827 = vmatpush1.msra.mxu0 0.0
    %828 = vmatprep.subr.mxu0 0.0
    %829 = vmatpush1.msra.mxu0 0.0
    %830 = vmatprep.subr.mxu0 0.0
    %831 = vmatpush1.msra.mxu0 0.0
    %832 = vmatprep.subr.mxu0 0.0
    %833 = vmatpush1.msra.mxu0 0.0
    %834 = vmatprep.subr.mxu0 0.0
    %835 = vmatpush1.msra.mxu0 0.0
    %836 = vmatprep.mubr.f32.mxu0 0.0
    %837 = vmatmul.mubr.f32.gmra.mrb[0].mxu0 %v770
    %v838 = vpop.f32.mrb[0].mxu0
    %v839 = vadd.f32 0.0, %v838
    %v840 = vpop.f32.mrb[0].mxu0
    %v841 = vadd.f32 0.0, %v840
    %842 = vdwg.mxu0
    %v843 = vadd.f32 %v191, %v839
    %v844 = vxor.u32 %v843, 2147483648
    %v845 = vmul.f32 %v844, 1.442695
    %v846 = vpow.pop %v845
    %v847 = vadd.f32 %v846, 1.0
    %v848 = vrcp.pop %v847
    %v849 = vmul.f32 1.0, %v848
    %v850 = vadd.f32 %v841, %v304
    %v851 = vmul.f32 %v849, %v850
    %v852 = vrot.slane %v191, 2
    %v854 = vadd.f32 %v852, %v851
    %v855 = vtanh.pop %v854
    %v856 = vsub.f32 1.0, %v849
    %858 = vrot.lane.b32.xlu0 %v855, 64
    %v859 = vpop.permute.xlu0 %858
    %v861 = vmul.f32 %v856, %v859
    %v862 = vmul.f32 %v849, %v756
    %v863 = vadd.f32 %v861, %v862
    %v866 = vunpack.c.l.s4 1983009808
    %v867 = vunpack.c.0.s8 %v866
    %v868 = vlaneseq
    %v869 = vshrl.u32 %v868, 7
    %v870 = vsub.s32 %v867, %v869
    %v871 = vrot.slane %v863, %v870
    %872 = vrot.lane.b32.xlu0 %v871, 64
    %v873 = vpop.permute.xlu0 %872
    %875 = vst.msk [vmem:[%s552] sm:$0x3] %vm331, %v873
    %876 = vst.msk [vmem:[%s550] sm:$0x3] %vm334, %v873
    %v877 = vsel %vm218, %v873, 0
    %879 = vmatprep.subr.mxu0 %v202
    %880 = vmatpush1.msra.mxu0 %v201
    %881 = vmatprep.subr.mxu0 %v204
    %882 = vmatpush1.msra.mxu0 %v203
    %883 = vmatprep.subr.mxu0 %v206
    %884 = vmatpush1.msra.mxu0 %v205
    %885 = vmatprep.subr.mxu0 %v208
    %886 = vmatpush1.msra.mxu0 %v207
    %887 = vmatprep.subr.mxu0 %v210
    %888 = vmatpush1.msra.mxu0 %v209
    %889 = vmatprep.subr.mxu0 %v212
    %890 = vmatpush1.msra.mxu0 %v211
    %891 = vmatprep.subr.mxu0 %v214
    %892 = vmatpush1.msra.mxu0 %v213
    %893 = vmatprep.subr.mxu0 %v216
    %894 = vmatpush1.msra.mxu0 %v215
    %895 = vmatprep.subr.mxu0 0.0
    %896 = vmatpush1.msra.mxu0 0.0
    %897 = vmatprep.subr.mxu0 0.0
    %898 = vmatpush1.msra.mxu0 0.0
    %899 = vmatprep.subr.mxu0 0.0
    %900 = vmatpush1.msra.mxu0 0.0
    %901 = vmatprep.subr.mxu0 0.0
    %902 = vmatpush1.msra.mxu0 0.0
    %903 = vmatprep.subr.mxu0 0.0
    %904 = vmatpush1.msra.mxu0 0.0
    %905 = vmatprep.subr.mxu0 0.0
    %906 = vmatpush1.msra.mxu0 0.0
    %907 = vmatprep.subr.mxu0 0.0
    %908 = vmatpush1.msra.mxu0 0.0
    %909 = vmatprep.subr.mxu0 0.0
    %910 = vmatpush1.msra.mxu0 0.0
    %911 = vmatprep.subr.mxu0 0.0
    %912 = vmatpush1.msra.mxu0 0.0
    %913 = vmatprep.subr.mxu0 0.0
    %914 = vmatpush1.msra.mxu0 0.0
    %915 = vmatprep.subr.mxu0 0.0
    %916 = vmatpush1.msra.mxu0 0.0
    %917 = vmatprep.subr.mxu0 0.0
    %918 = vmatpush1.msra.mxu0 0.0
    %919 = vmatprep.subr.mxu0 0.0
    %920 = vmatpush1.msra.mxu0 0.0
    %921 = vmatprep.subr.mxu0 0.0
    %922 = vmatpush1.msra.mxu0 0.0
    %923 = vmatprep.subr.mxu0 0.0
    %924 = vmatpush1.msra.mxu0 0.0
    %925 = vmatprep.subr.mxu0 0.0
    %926 = vmatpush1.msra.mxu0 0.0
    %927 = vmatprep.subr.mxu0 0.0
    %928 = vmatpush1.msra.mxu0 0.0
    %929 = vmatprep.subr.mxu0 0.0
    %930 = vmatpush1.msra.mxu0 0.0
    %931 = vmatprep.subr.mxu0 0.0
    %932 = vmatpush1.msra.mxu0 0.0
    %933 = vmatprep.subr.mxu0 0.0
    %934 = vmatpush1.msra.mxu0 0.0
    %935 = vmatprep.subr.mxu0 0.0
    %936 = vmatpush1.msra.mxu0 0.0
    %937 = vmatprep.subr.mxu0 0.0
    %938 = vmatpush1.msra.mxu0 0.0
    %939 = vmatprep.subr.mxu0 0.0
    %940 = vmatpush1.msra.mxu0 0.0
    %941 = vmatprep.subr.mxu0 0.0
    %942 = vmatpush1.msra.mxu0 0.0
    %943 = vmatprep.mubr.f32.mxu0 0.0
    %944 = vmatmul.mubr.f32.gmra.mrb[0].mxu0 %v877
    %v945 = vpop.f32.mrb[0].mxu0
    %v946 = vadd.f32 0.0, %v945
    %v947 = vpop.f32.mrb[0].mxu0
    %v948 = vadd.f32 0.0, %v947
    %949 = vdwg.mxu0
    %v950 = vadd.f32 %v190, %v946
    %v951 = vxor.u32 %v950, 2147483648
    %v952 = vmul.f32 %v951, 1.442695
    %v953 = vpow.pop %v952
    %v954 = vadd.f32 %v953, 1.0
    %v955 = vrcp.pop %v954
    %v956 = vmul.f32 1.0, %v955
    %v957 = vadd.f32 %v948, %v304
    %v958 = vmul.f32 %v956, %v957
    %v959 = vrot.slane %v190, 2
    %v961 = vadd.f32 %v959, %v958
    %v962 = vtanh.pop %v961
    %v963 = vsub.f32 1.0, %v956
    %965 = vrot.lane.b32.xlu0 %v962, 64
    %v966 = vpop.permute.xlu0 %965
    %v968 = vmul.f32 %v963, %v966
    %v969 = vmul.f32 %v956, %v863
    %v970 = vadd.f32 %v968, %v969
    %v973 = vunpack.c.l.s4 1983009808
    %v974 = vunpack.c.0.s8 %v973
    %v975 = vlaneseq
    %v976 = vshrl.u32 %v975, 7
    %v977 = vsub.s32 %v974, %v976
    %v978 = vrot.slane %v970, %v977
    %979 = vrot.lane.b32.xlu0 %v978, 64
    %v980 = vpop.permute.xlu0 %979
    %982 = vst.msk [vmem:[%s443] sm:$0x3] %vm331, %v980
    %983 = vst.msk [vmem:[%s441] sm:$0x3] %vm334, %v980
    %v984 = vsel %vm218, %v980, 0
    %986 = vmatprep.subr.mxu0 %v202
    %987 = vmatpush1.msra.mxu0 %v201
    %988 = vmatprep.subr.mxu0 %v204
    %989 = vmatpush1.msra.mxu0 %v203
    %990 = vmatprep.subr.mxu0 %v206
    %991 = vmatpush1.msra.mxu0 %v205
    %992 = vmatprep.subr.mxu0 %v208
    %993 = vmatpush1.msra.mxu0 %v207
    %994 = vmatprep.subr.mxu0 %v210
    %995 = vmatpush1.msra.mxu0 %v209
    %996 = vmatprep.subr.mxu0 %v212
    %997 = vmatpush1.msra.mxu0 %v211
    %998 = vmatprep.subr.mxu0 %v214
    %999 = vmatpush1.msra.mxu0 %v213
    %1000 = vmatprep.subr.mxu0 %v216
    %1001 = vmatpush1.msra.mxu0 %v215
    %1002 = vmatprep.subr.mxu0 0.0
    %1003 = vmatpush1.msra.mxu0 0.0
    %1004 = vmatprep.subr.mxu0 0.0
    %1005 = vmatpush1.msra.mxu0 0.0
    %1006 = vmatprep.subr.mxu0 0.0
    %1007 = vmatpush1.msra.mxu0 0.0
    %1008 = vmatprep.subr.mxu0 0.0
    %1009 = vmatpush1.msra.mxu0 0.0
    %1010 = vmatprep.subr.mxu0 0.0
    %1011 = vmatpush1.msra.mxu0 0.0
    %1012 = vmatprep.subr.mxu0 0.0
    %1013 = vmatpush1.msra.mxu0 0.0
    %1014 = vmatprep.subr.mxu0 0.0
    %1015 = vmatpush1.msra.mxu0 0.0
    %1016 = vmatprep.subr.mxu0 0.0
    %1017 = vmatpush1.msra.mxu0 0.0
    %1018 = vmatprep.subr.mxu0 0.0
    %1019 = vmatpush1.msra.mxu0 0.0
    %1020 = vmatprep.subr.mxu0 0.0
    %1021 = vmatpush1.msra.mxu0 0.0
    %1022 = vmatprep.subr.mxu0 0.0
    %1023 = vmatpush1.msra.mxu0 0.0
    %1024 = vmatprep.subr.mxu0 0.0
    %1025 = vmatpush1.msra.mxu0 0.0
    %1026 = vmatprep.subr.mxu0 0.0
    %1027 = vmatpush1.msra.mxu0 0.0
    %1028 = vmatprep.subr.mxu0 0.0
    %1029 = vmatpush1.msra.mxu0 0.0
    %1030 = vmatprep.subr.mxu0 0.0
    %1031 = vmatpush1.msra.mxu0 0.0
    %1032 = vmatprep.subr.mxu0 0.0
    %1033 = vmatpush1.msra.mxu0 0.0
    %1034 = vmatprep.subr.mxu0 0.0
    %1035 = vmatpush1.msra.mxu0 0.0
    %1036 = vmatprep.subr.mxu0 0.0
    %1037 = vmatpush1.msra.mxu0 0.0
    %1038 = vmatprep.subr.mxu0 0.0
    %1039 = vmatpush1.msra.mxu0 0.0
    %1040 = vmatprep.subr.mxu0 0.0
    %1041 = vmatpush1.msra.mxu0 0.0
    %1042 = vmatprep.subr.mxu0 0.0
    %1043 = vmatpush1.msra.mxu0 0.0
    %1044 = vmatprep.subr.mxu0 0.0
    %1045 = vmatpush1.msra.mxu0 0.0
    %1046 = vmatprep.subr.mxu0 0.0
    %1047 = vmatpush1.msra.mxu0 0.0
    %1048 = vmatprep.subr.mxu0 0.0
    %1049 = vmatpush1.msra.mxu0 0.0
    %1050 = vmatprep.mubr.f32.mxu0 0.0
    %1051 = vmatmul.mubr.f32.gmra.mrb[0].mxu0 %v984
    %v1052 = vpop.f32.mrb[0].mxu0
    %v1053 = vadd.f32 0.0, %v1052
    %v1054 = vpop.f32.mrb[0].mxu0
    %v1055 = vadd.f32 0.0, %v1054
    %1056 = vdwg.mxu0
    %v1057 = vadd.f32 %v192, %v1053
    %v1058 = vxor.u32 %v1057, 2147483648
    %v1059 = vmul.f32 %v1058, 1.442695
    %v1060 = vpow.pop %v1059
    %v1061 = vadd.f32 %v1060, 1.0
    %v1062 = vrcp.pop %v1061
    %v1063 = vmul.f32 1.0, %v1062
    %v1064 = vadd.f32 %v1055, %v304
    %v1065 = vmul.f32 %v1063, %v1064
    %v1066 = vrot.slane %v192, 2
    %v1068 = vadd.f32 %v1066, %v1065
    %v1069 = vtanh.pop %v1068
    %v1070 = vsub.f32 1.0, %v1063
    %1072 = vrot.lane.b32.xlu0 %v1069, 64
    %v1073 = vpop.permute.xlu0 %1072
    %v1075 = vmul.f32 %v1070, %v1073
    %v1076 = vmul.f32 %v1063, %v970
    %v1077 = vadd.f32 %v1075, %v1076
    %v1080 = vunpack.c.l.s4 1983009808
    %v1081 = vunpack.c.0.s8 %v1080
    %v1082 = vlaneseq
    %v1083 = vshrl.u32 %v1082, 7
    %v1084 = vsub.s32 %v1081, %v1083
    %v1085 = vrot.slane %v1077, %v1084
    %1086 = vrot.lane.b32.xlu0 %v1085, 64
    %v1087 = vpop.permute.xlu0 %1086
    %1089 = vst.msk [vmem:[%s333] sm:$0x3] %vm331, %v1087
    %1090 = vst.msk [vmem:[#allocation2] sm:$0x3] %vm334, %v1087
    %v1091 = vld [vmem:[#allocation2] sm:$0x3]
    %v1092 = vld [vmem:[#allocation2 + $0x2] sm:$0x3]
    %v1093 = vld [vmem:[#allocation2 + $0x4] sm:$0x3]
    %v1094 = vld [vmem:[#allocation2 + $0x6] sm:$0x3]
    %v1095 = vld [vmem:[#allocation2 + $0x8] sm:$0x3]
    %v1096 = vld [vmem:[#allocation2 + $0xa] sm:$0x3]
    %v1097 = vld [vmem:[#allocation2 + $0xc] sm:$0x3]
    %v1098 = vld [vmem:[#allocation2 + $0xe] sm:$0x3]
    %v1099 = vld [vmem:[%s8] sm:$0x7]
    %v1100 = vld [vmem:[%s5] sm:$0xff]
    %v1101 = vld [vmem:[%s5 + $0x8] sm:$0xff]
    %v1102 = vld [vmem:[%s5 + $0x10] sm:$0xff]
    %v1103 = vld [vmem:[%s5 + $0x18] sm:$0xff]
    %v1104 = vld [vmem:[%s5 + $0x20] sm:$0xff]
    %v1105 = vld [vmem:[%s5 + $0x28] sm:$0xff]
    %v1106 = vld [vmem:[%s5 + $0x30] sm:$0xff]
    %v1107 = vld [vmem:[%s5 + $0x38] sm:$0xff]
    %v1108 = vlaneseq
    %v1109 = vshrl.u32 %v1108, 7
    %v1110 = vsub.s32 0, %v1109
    %v1111 = vrot.slane %v1099, %v1110
    %v1120 = vcombine.low %v1091, %v1092
    %v1121 = vcombine.low %v1093, %v1094
    %v1123 = vunpack.c.l.s4 1983009808
    %v1124 = vunpack.c.0.s8 %v1123
    %v1125 = vlaneseq
    %v1126 = vshrl.u32 %v1125, 7
    %v1127 = vsub.s32 %v1124, %v1126
    %v1128 = vrot.slane %v1120, %v1127
    %v1130 = vunpack.c.l.s4 1983009808
    %v1131 = vunpack.c.0.s8 %v1130
    %v1132 = vlaneseq
    %v1133 = vshrl.u32 %v1132, 7
    %v1134 = vsub.s32 %v1131, %v1133
    %v1135 = vrot.slane %v1121, %v1134
    %v1136 = vcombine.low %v1128, %v1135
    %v1137 = vcombine.low %v1095, %v1096
    %v1138 = vcombine.low %v1097, %v1098
    %v1140 = vunpack.c.l.s4 1983009808
    %v1141 = vunpack.c.0.s8 %v1140
    %v1142 = vlaneseq
    %v1143 = vshrl.u32 %v1142, 7
    %v1144 = vsub.s32 %v1141, %v1143
    %v1145 = vrot.slane %v1137, %v1144
    %v1147 = vunpack.c.l.s4 1983009808
    %v1148 = vunpack.c.0.s8 %v1147
    %v1149 = vlaneseq
    %v1150 = vshrl.u32 %v1149, 7
    %v1151 = vsub.s32 %v1148, %v1150
    %v1152 = vrot.slane %v1138, %v1151
    %v1153 = vcombine.low %v1145, %v1152
    %v1154 = vsel %vm218, %v1136, 0
    %v1156 = vsel %vm218, %v1153, 0
    %1158 = vmatprep.subr.mxu0 0.0
    %1159 = vmatpush1.msra.mxu0 %v1100
    %1160 = vmatprep.subr.mxu0 0.0
    %1161 = vmatpush1.msra.mxu0 %v1101
    %1162 = vmatprep.subr.mxu0 0.0
    %1163 = vmatpush1.msra.mxu0 %v1102
    %1164 = vmatprep.subr.mxu0 0.0
    %1165 = vmatpush1.msra.mxu0 %v1103
    %1166 = vmatprep.subr.mxu0 0.0
    %1167 = vmatpush1.msra.mxu0 %v1104
    %1168 = vmatprep.subr.mxu0 0.0
    %1169 = vmatpush1.msra.mxu0 %v1105
    %1170 = vmatprep.subr.mxu0 0.0
    %1171 = vmatpush1.msra.mxu0 %v1106
    %1172 = vmatprep.subr.mxu0 0.0
    %1173 = vmatpush1.msra.mxu0 %v1107
    %1174 = vmatprep.subr.mxu0 0.0
    %1175 = vmatpush1.msra.mxu0 0.0
    %1176 = vmatprep.subr.mxu0 0.0
    %1177 = vmatpush1.msra.mxu0 0.0
    %1178 = vmatprep.subr.mxu0 0.0
    %1179 = vmatpush1.msra.mxu0 0.0
    %1180 = vmatprep.subr.mxu0 0.0
    %1181 = vmatpush1.msra.mxu0 0.0
    %1182 = vmatprep.subr.mxu0 0.0
    %1183 = vmatpush1.msra.mxu0 0.0
    %1184 = vmatprep.subr.mxu0 0.0
    %1185 = vmatpush1.msra.mxu0 0.0
    %1186 = vmatprep.subr.mxu0 0.0
    %1187 = vmatpush1.msra.mxu0 0.0
    %1188 = vmatprep.subr.mxu0 0.0
    %1189 = vmatpush1.msra.mxu0 0.0
    %1190 = vmatprep.subr.mxu0 0.0
    %1191 = vmatpush1.msra.mxu0 0.0
    %1192 = vmatprep.subr.mxu0 0.0
    %1193 = vmatpush1.msra.mxu0 0.0
    %1194 = vmatprep.subr.mxu0 0.0
    %1195 = vmatpush1.msra.mxu0 0.0
    %1196 = vmatprep.subr.mxu0 0.0
    %1197 = vmatpush1.msra.mxu0 0.0
    %1198 = vmatprep.subr.mxu0 0.0
    %1199 = vmatpush1.msra.mxu0 0.0
    %1200 = vmatprep.subr.mxu0 0.0
    %1201 = vmatpush1.msra.mxu0 0.0
    %1202 = vmatprep.subr.mxu0 0.0
    %1203 = vmatpush1.msra.mxu0 0.0
    %1204 = vmatprep.subr.mxu0 0.0
    %1205 = vmatpush1.msra.mxu0 0.0
    %1206 = vmatprep.subr.mxu0 0.0
    %1207 = vmatpush1.msra.mxu0 0.0
    %1208 = vmatprep.subr.mxu0 0.0
    %1209 = vmatpush1.msra.mxu0 0.0
    %1210 = vmatprep.subr.mxu0 0.0
    %1211 = vmatpush1.msra.mxu0 0.0
    %1212 = vmatprep.subr.mxu0 0.0
    %1213 = vmatpush1.msra.mxu0 0.0
    %1214 = vmatprep.subr.mxu0 0.0
    %1215 = vmatpush1.msra.mxu0 0.0
    %1216 = vmatprep.subr.mxu0 0.0
    %1217 = vmatpush1.msra.mxu0 0.0
    %1218 = vmatprep.subr.mxu0 0.0
    %1219 = vmatpush1.msra.mxu0 0.0
    %1220 = vmatprep.subr.mxu0 0.0
    %1221 = vmatpush1.msra.mxu0 0.0
    %1222 = vmatprep.mubr.f32.mxu0 0.0
    %1223 = vmatmul.mubr.f32.gmra.mrb[0].mxu0 %v1154
    %v1224 = vpop.f32.mrb[0].mxu0
    %v1225 = vadd.f32 %v1111, %v1224
    %v1226 = vpop.f32.mrb[0].mxu0
    %1227 = vmatprep.mubr.f32.mxu0 0.0
    %1228 = vmatmul.mubr.f32.gmra.mrb[0].mxu0 %v1156
    %v1229 = vpop.f32.mrb[0].mxu0
    %v1230 = vadd.f32 %v1111, %v1229
    %v1231 = vpop.f32.mrb[0].mxu0
    %1232 = vdwg.mxu0
    %1233 = vrot.lane.b32.xlu0 %v49, 4
    %v1234 = vpop.permute.xlu0 %1233
    %1235 = vrot.lane.b32.xlu0 %v50, 4
    %v1236 = vpop.permute.xlu0 %1235
    %v1239 = vmul.f32 %v49, %v1234
    %v1240 = vmul.f32 %v50, %v1236
    %v1241 = vsub.f32 1.0, %v49
    %v1242 = vsub.f32 1.0, %v50
    %1245 = vrot.lane.b32.xlu0 %v1225, 4
    %v1246 = vpop.permute.xlu0 %1245
    %1247 = vrot.lane.b32.xlu0 %v1230, 4
    %v1248 = vpop.permute.xlu0 %1247
    %v1251 = vmul.f32 %v1241, %v1246
    %v1252 = vmul.f32 %v1242, %v1248
    %v1253 = vadd.f32 %v1239, %v1251
    %v1254 = vadd.f32 %v1240, %v1252
    %1257 = vrot.lane.b32.xlu0 %v1253, 4
    %v1258 = vpop.permute.xlu0 %1257
    %1259 = vrot.lane.b32.xlu0 %v1254, 4
    %v1260 = vpop.permute.xlu0 %1259
    %vm1263 = vcmask 64512
    %v1264 = vsel %vm1263, %v49, %v1258
    %v1265 = vsel %vm1263, %v50, %v1260
    %v1266 = vld [vmem:[%s6] sm:$0xff]
    %v1267 = vld [vmem:[%s6 + $0x8] sm:$0xf]
    %v1268 = vlaneseq
    %v1269 = vshrl.u32 %v1268, 7
    %v1270 = vsub.s32 1, %v1269
    %v1271 = vrot.slane %v1099, %v1270
    %vm1272 = vcmask 97280
    %v1274 = vsel %vm1272, %v1264, 0
    %v1277 = vsel %vm1272, %v1265, 0
    %vm1279 = vcmask 1043456
    %v1281 = vsel %vm1279, %v1267, 0
    %1283 = vmatprep.subr.mxu0 0.0
    %1284 = vmatpush1.msra.mxu0 %v1266
    %1285 = vmatprep.subr.mxu0 0.0
    %1286 = vmatpush1.msra.mxu0 %v1281
    %1287 = vmatprep.subr.mxu0 0.0
    %1288 = vmatpush1.msra.mxu0 0.0
    %1289 = vmatprep.subr.mxu0 0.0
    %1290 = vmatpush1.msra.mxu0 0.0
    %1291 = vmatprep.subr.mxu0 0.0
    %1292 = vmatpush1.msra.mxu0 0.0
    %1293 = vmatprep.subr.mxu0 0.0
    %1294 = vmatpush1.msra.mxu0 0.0
    %1295 = vmatprep.subr.mxu0 0.0
    %1296 = vmatpush1.msra.mxu0 0.0
    %1297 = vmatprep.subr.mxu0 0.0
    %1298 = vmatpush1.msra.mxu0 0.0
    %1299 = vmatprep.subr.mxu0 0.0
    %1300 = vmatpush1.msra.mxu0 0.0
    %1301 = vmatprep.subr.mxu0 0.0
    %1302 = vmatpush1.msra.mxu0 0.0
    %1303 = vmatprep.subr.mxu0 0.0
    %1304 = vmatpush1.msra.mxu0 0.0
    %1305 = vmatprep.subr.mxu0 0.0
    %1306 = vmatpush1.msra.mxu0 0.0
    %1307 = vmatprep.subr.mxu0 0.0
    %1308 = vmatpush1.msra.mxu0 0.0
    %1309 = vmatprep.subr.mxu0 0.0
    %1310 = vmatpush1.msra.mxu0 0.0
    %1311 = vmatprep.subr.mxu0 0.0
    %1312 = vmatpush1.msra.mxu0 0.0
    %1313 = vmatprep.subr.mxu0 0.0
    %1314 = vmatpush1.msra.mxu0 0.0
    %1315 = vmatprep.subr.mxu0 0.0
    %1316 = vmatpush1.msra.mxu0 0.0
    %1317 = vmatprep.subr.mxu0 0.0
    %1318 = vmatpush1.msra.mxu0 0.0
    %1319 = vmatprep.subr.mxu0 0.0
    %1320 = vmatpush1.msra.mxu0 0.0
    %1321 = vmatprep.subr.mxu0 0.0
    %1322 = vmatpush1.msra.mxu0 0.0
    %1323 = vmatprep.subr.mxu0 0.0
    %1324 = vmatpush1.msra.mxu0 0.0
    %1325 = vmatprep.subr.mxu0 0.0
    %1326 = vmatpush1.msra.mxu0 0.0
    %1327 = vmatprep.subr.mxu0 0.0
    %1328 = vmatpush1.msra.mxu0 0.0
    %1329 = vmatprep.subr.mxu0 0.0
    %1330 = vmatpush1.msra.mxu0 0.0
    %1331 = vmatprep.subr.mxu0 0.0
    %1332 = vmatpush1.msra.mxu0 0.0
    %1333 = vmatprep.subr.mxu0 0.0
    %1334 = vmatpush1.msra.mxu0 0.0
    %1335 = vmatprep.subr.mxu0 0.0
    %1336 = vmatpush1.msra.mxu0 0.0
    %1337 = vmatprep.subr.mxu0 0.0
    %1338 = vmatpush1.msra.mxu0 0.0
    %1339 = vmatprep.subr.mxu0 0.0
    %1340 = vmatpush1.msra.mxu0 0.0
    %1341 = vmatprep.subr.mxu0 0.0
    %1342 = vmatpush1.msra.mxu0 0.0
    %1343 = vmatprep.subr.mxu0 0.0
    %1344 = vmatpush1.msra.mxu0 0.0
    %1345 = vmatprep.subr.mxu0 0.0
    %1346 = vmatpush1.msra.mxu0 0.0
    %1347 = vmatprep.mubr.f32.mxu0 0.0
    %1348 = vmatmul.mubr.f32.gmra.mrb[0].mxu0 %v1274
    %v1349 = vpop.f32.mrb[0].mxu0
    %v1350 = vadd.f32 %v1271, %v1349
    %v1351 = vpop.f32.mrb[0].mxu0
    %1352 = vmatprep.mubr.f32.mxu0 0.0
    %1353 = vmatmul.mubr.f32.gmra.mrb[0].mxu0 %v1277
    %v1354 = vpop.f32.mrb[0].mxu0
    %v1355 = vadd.f32 %v1271, %v1354
    %v1356 = vpop.f32.mrb[0].mxu0
    %1357 = vdwg.mxu0
    %v1358 = vxor.u32 %v1350, 2147483648
    %v1359 = vxor.u32 %v1355, 2147483648
    %v1360 = vmul.f32 %v1358, 1.442695
    %v1361 = vpow.pop %v1360
    %v1362 = vmul.f32 %v1359, 1.442695
    %v1363 = vpow.pop %v1362
    %v1364 = vadd.f32 %v1361, 1.0
    %v1365 = vadd.f32 %v1363, 1.0
    %v1366 = vrcp.pop %v1364
    %v1367 = vmul.f32 1.0, %v1366
    %v1368 = vrcp.pop %v1365
    %v1369 = vmul.f32 1.0, %v1368
    %v1370 = vld [vmem:[%s7] sm:$0xf]
    %v1371 = vlaneseq
    %v1372 = vshrl.u32 %v1371, 7
    %v1373 = vsub.s32 2, %v1372
    %v1374 = vrot.slane %v1099, %v1373
    %vm1375 = vcmask 31744
    %v1377 = vsel %vm1375, %v1367, 0
    %v1380 = vsel %vm1375, %v1369, 0
    %v1383 = vsel %vm1279, %v1370, 0
    %1385 = vmatprep.subr.mxu0 0.0
    %1386 = vmatpush1.msra.mxu0 %v1383
    %1387 = vmatprep.subr.mxu0 0.0
    %1388 = vmatpush1.msra.mxu0 0.0
    %1389 = vmatprep.subr.mxu0 0.0
    %1390 = vmatpush1.msra.mxu0 0.0
    %1391 = vmatprep.subr.mxu0 0.0
    %1392 = vmatpush1.msra.mxu0 0.0
    %1393 = vmatprep.subr.mxu0 0.0
    %1394 = vmatpush1.msra.mxu0 0.0
    %1395 = vmatprep.subr.mxu0 0.0
    %1396 = vmatpush1.msra.mxu0 0.0
    %1397 = vmatprep.subr.mxu0 0.0
    %1398 = vmatpush1.msra.mxu0 0.0
    %1399 = vmatprep.subr.mxu0 0.0
    %1400 = vmatpush1.msra.mxu0 0.0
    %1401 = vmatprep.subr.mxu0 0.0
    %1402 = vmatpush1.msra.mxu0 0.0
    %1403 = vmatprep.subr.mxu0 0.0
    %1404 = vmatpush1.msra.mxu0 0.0
    %1405 = vmatprep.subr.mxu0 0.0
    %1406 = vmatpush1.msra.mxu0 0.0
    %1407 = vmatprep.subr.mxu0 0.0
    %1408 = vmatpush1.msra.mxu0 0.0
    %1409 = vmatprep.subr.mxu0 0.0
    %1410 = vmatpush1.msra.mxu0 0.0
    %1411 = vmatprep.subr.mxu0 0.0
    %1412 = vmatpush1.msra.mxu0 0.0
    %1413 = vmatprep.subr.mxu0 0.0
    %1414 = vmatpush1.msra.mxu0 0.0
    %1415 = vmatprep.subr.mxu0 0.0
    %1416 = vmatpush1.msra.mxu0 0.0
    %1417 = vmatprep.subr.mxu0 0.0
    %1418 = vmatpush1.msra.mxu0 0.0
    %1419 = vmatprep.subr.mxu0 0.0
    %1420 = vmatpush1.msra.mxu0 0.0
    %1421 = vmatprep.subr.mxu0 0.0
    %1422 = vmatpush1.msra.mxu0 0.0
    %1423 = vmatprep.subr.mxu0 0.0
    %1424 = vmatpush1.msra.mxu0 0.0
    %1425 = vmatprep.subr.mxu0 0.0
    %1426 = vmatpush1.msra.mxu0 0.0
    %1427 = vmatprep.subr.mxu0 0.0
    %1428 = vmatpush1.msra.mxu0 0.0
    %1429 = vmatprep.subr.mxu0 0.0
    %1430 = vmatpush1.msra.mxu0 0.0
    %1431 = vmatprep.subr.mxu0 0.0
    %1432 = vmatpush1.msra.mxu0 0.0
    %1433 = vmatprep.subr.mxu0 0.0
    %1434 = vmatpush1.msra.mxu0 0.0
    %1435 = vmatprep.subr.mxu0 0.0
    %1436 = vmatpush1.msra.mxu0 0.0
    %1437 = vmatprep.subr.mxu0 0.0
    %1438 = vmatpush1.msra.mxu0 0.0
    %1439 = vmatprep.subr.mxu0 0.0
    %1440 = vmatpush1.msra.mxu0 0.0
    %1441 = vmatprep.subr.mxu0 0.0
    %1442 = vmatpush1.msra.mxu0 0.0
    %1443 = vmatprep.subr.mxu0 0.0
    %1444 = vmatpush1.msra.mxu0 0.0
    %1445 = vmatprep.subr.mxu0 0.0
    %1446 = vmatpush1.msra.mxu0 0.0
    %1447 = vmatprep.subr.mxu0 0.0
    %1448 = vmatpush1.msra.mxu0 0.0
    %1449 = vmatprep.mubr.f32.mxu0 0.0
    %1450 = vmatmul.mubr.f32.gmra.mrb[0].mxu0 %v1377
    %v1451 = vpop.f32.mrb[0].mxu0
    %v1452 = vadd.f32 %v1374, %v1451
    %v1453 = vpop.f32.mrb[0].mxu0
    %1454 = vmatprep.mubr.f32.mxu0 0.0
    %1455 = vmatmul.mubr.f32.gmra.mrb[0].mxu0 %v1380
    %v1456 = vpop.f32.mrb[0].mxu0
    %v1457 = vadd.f32 %v1374, %v1456
    %v1458 = vpop.f32.mrb[0].mxu0
    %1459 = vdwg.mxu0
    %1462 = vrot.lane.b32.xlu0 %v1452, 4
    %v1463 = vpop.permute.xlu0 %1462
    %1464 = vrot.lane.b32.xlu0 %v1457, 4
    %v1465 = vpop.permute.xlu0 %1464
    %v1468 = vmul.f32 %v1241, %v1463
    %v1469 = vmul.f32 %v1242, %v1465
    %v1470 = vadd.f32 %v1239, %v1468
    %v1471 = vadd.f32 %v1240, %v1469
    %1474 = vrot.lane.b32.xlu0 %v1470, 124
    %v1475 = vpop.permute.xlu0 %1474
    %1476 = vrot.lane.b32.xlu0 %v1471, 124
    %v1477 = vpop.permute.xlu0 %1476
    %1480 = vst.msk [vmem:[%s9] sm:$0xff] %vm1375, %v1475
    %1481 = vst.msk [vmem:[%s9 + $0x8] sm:$0xff] %vm1375, %v1477
    %v1482 = vsub.f32 %v1225, %v49
    %v1483 = vsub.f32 %v1230, %v50
    %1484 = vrot.lane.b32.xlu0 %v1253, 124
    %v1485 = vpop.permute.xlu0 %1484
    %1486 = vrot.lane.b32.xlu0 %v1254, 124
    %v1487 = vpop.permute.xlu0 %1486
    %v1490 = vsub.f32 %v1452, %v1485
    %v1491 = vsub.f32 %v1457, %v1487
    %v1492 = vmul.f32 %v1482, %v1482
    %v1493 = vmul.f32 %v1483, %v1483
    %1494 = vrot.lane.b32.xlu0 %v49, 124
    %v1495 = vpop.permute.xlu0 %1494
    %1496 = vrot.lane.b32.xlu0 %v50, 124
    %v1497 = vpop.permute.xlu0 %1496
    %v1500 = vmul.f32 %v1492, %v1495
    %v1501 = vmul.f32 %v1493, %v1497
    %v1502 = vsel %vm1375, %v1500, 0.0
    %v1503 = vsel %vm1375, %v1501, 0.0
    %v1504 = vadd.f32 %v1502, %v1503
    %1505 = vadd.xlane.f32.xlu0 %v1504
    %v1506 = vpop.xlane.xlu0 %1505
    %v1507 = vrot.slane %v1506, 4
    %v1508 = vadd.f32 %v1506, %v1507
    %v1509 = vrot.slane %v1508, 2
    %v1510 = vadd.f32 %v1508, %v1509
    %v1511 = vrot.slane %v1510, 1
    %v1512 = vadd.f32 %v1510, %v1511
    %s1513 = vtos %v1512
    %s1514 = scalar_lea.smem [#allocation6], 0
    %1515 = sst [smem:[%s1514]] %s1513
    %v1516 = vsel %vm1375, %v1495, 0.0
    %v1517 = vsel %vm1375, %v1497, 0.0
    %v1518 = vadd.f32 %v1516, %v1517
    %1519 = vadd.xlane.f32.xlu0 %v1518
    %v1520 = vpop.xlane.xlu0 %1519
    %v1521 = vrot.slane %v1520, 4
    %v1522 = vadd.f32 %v1520, %v1521
    %v1523 = vrot.slane %v1522, 2
    %v1524 = vadd.f32 %v1522, %v1523
    %v1525 = vrot.slane %v1524, 1
    %v1526 = vadd.f32 %v1524, %v1525
    %s1527 = vtos %v1526
    %s1528 = scalar_lea.smem [#allocation6], 1
    %1529 = sst [smem:[%s1528]] %s1527
    %v1530 = vmul.f32 %v1490, %v1490
    %v1531 = vmul.f32 %v1491, %v1491
    %v1532 = vsel %vm1375, %v1530, 0.0
    %v1533 = vsel %vm1375, %v1531, 0.0
    %v1534 = vadd.f32 %v1532, %v1533
    %1535 = vadd.xlane.f32.xlu0 %v1534
    %v1536 = vpop.xlane.xlu0 %1535
    %v1537 = vrot.slane %v1536, 4
    %v1538 = vadd.f32 %v1536, %v1537
    %v1539 = vrot.slane %v1538, 2
    %v1540 = vadd.f32 %v1538, %v1539
    %v1541 = vrot.slane %v1540, 1
    %v1542 = vadd.f32 %v1540, %v1541
    %s1543 = vtos %v1542
    %s1544 = scalar_lea.smem [#allocation6], 2
    %1545 = sst [smem:[%s1544]] %s1543
    // Predicated region
    $region42: #{tpu_custom_call.1} parent=1 // pred_check
      _
    $region43: #{tpu_custom_call.1} parent=1 // pred_check_branch
      %1547 = sbr.rel (0) target = $region45
    $region44: #{tpu_custom_call.1} parent=1 // pred_region
      _
    $region45: #{tpu_custom_call.1} parent=1 // pred_fallthru
      _
    // Predicated region
    $region46: #{tpu_custom_call.1} parent=1 // pred_check
      _
    $region47: #{tpu_custom_call.1} parent=1 // pred_check_branch
      %1549 = sbr.rel (0) target = $region49
    $region48: #{tpu_custom_call.1} parent=1 // pred_region
      %s1551 = ssub.s32 16, 16
      %1552 = vsyncadd [#allocation5], %s1551
      %1555 = dma.smem_to_hbm [#allocation6], 16, %s10, [#allocation5]
    $region49: #{tpu_custom_call.1} parent=1 // pred_fallthru
      _
    // Predicated region
    $region50: #{tpu_custom_call.1} parent=1 // pred_check
      _
    $region51: #{tpu_custom_call.1} parent=1 // pred_check_branch
      %1557 = sbr.rel (0) target = $region53
    $region52: #{tpu_custom_call.1} parent=1 // pred_region
      _
    $region53: #{tpu_custom_call.1} parent=1 // pred_fallthru
      _
    // Predicated region
    $region54: #{tpu_custom_call.1} parent=1 // pred_check
      _
    $region55: #{tpu_custom_call.1} parent=1 // pred_check_branch
      %1559 = sbr.rel (0) target = $region57
    $region56: #{tpu_custom_call.1} parent=1 // pred_region
      %1560 = dma.done [#allocation5], 16
    $region57: #{tpu_custom_call.1} parent=1 // pred_fallthru
      _
    %1561 = sfence
    %1562 = vsyncpa [#allocation4], 1
    %1563 = vsyncpa [#allocation5], 1

</llo_original>
